<compile_context>
chip_gen: v6e
topology: v6e:2x2x1
jax: 0.10.0
libtpu: 0.0.40
codegen_flags: <defaults>
</compile_context>

<pallas_src>
import functools

import jax
import jax.numpy as jnp
from jax.experimental import pallas as pl
from jax.experimental.pallas import tpu as pltpu

INPUT_SIZE = 28 * 28     # 784
NUM_CLASSES = 10


def _round_up(x, m):
    return ((x + m - 1) // m) * m


def _choose_tile_b(B, tile_b):
    # Aim for ~8 grid steps (keeps both v7x TCs busy and lets the input DMA
    # overlap compute), floor of 128 rows, capped at tile_b, multiple of 8.
    tb = min(tile_b, max(128, _round_up(pl.cdiv(B, 8), 128)))
    return max(8, (tb // 8) * 8)


def seqnet_kernel(x_ref, w_ref, b_ref, o_ref):
    # x_ref: (TB, 784) f32   w_ref: (784, 10) bf16   b_ref: (1, 10) f32
    # o_ref: (TB, 10) f32
    # x = x*1.5 + 3 (in f32, on the VPU — free under the HBM bound)
    x = x_ref[...] * jnp.float32(1.5) + jnp.float32(3.0)
    # TODO(synk): tsk.TSKONE source not provided; TSKONE(x, zeros) treated as identity.

    # l1: Linear(784 -> 10); bf16 operands, f32 MXU accumulate, f32 bias add.
    logits = jnp.dot(x.astype(jnp.bfloat16), w_ref[...],
                     preferred_element_type=jnp.float32) + b_ref[...]

    # x = torch.abs(x)
    a = jnp.abs(logits)

    # F.log_softmax(x, dim=1) — numerically stable, f32, per-row (no cross-row mixing,
    # so garbage rows from the ragged last block stay contained and are never stored).
    m = jnp.max(a, axis=1, keepdims=True)
    e = jnp.exp(a - m)
    lse = m + jnp.log(jnp.sum(e, axis=1, keepdims=True))
    o_ref[...] = (a - lse).astype(o_ref.dtype)


@functools.partial(jax.jit, static_argnames=("tile_b",))
def seqnet_forward(x_nchw, w, b, *, tile_b=1024):
    """x_nchw: (B, 1, 28, 28) f32; w: (784, 10) f32 (PyTorch weight.T); b: (10,) f32."""
    B = x_nchw.shape[0]

    x2 = x_nchw.reshape(B, INPUT_SIZE)                 # glue: view(-1, 784), no copy
    w_bf = w.astype(jnp.bfloat16)                      # tiny (784x10), resident in VMEM
    b2 = b.astype(jnp.float32).reshape(1, NUM_CLASSES)

    tb = _choose_tile_b(B, tile_b)

    out = pl.pallas_call(
        seqnet_kernel,
        out_shape=jax.ShapeDtypeStruct((B, NUM_CLASSES), jnp.float32),
        grid=(pl.cdiv(B, tb),),                        # no batch padding; ragged block OK
        in_specs=[
            pl.BlockSpec((tb, INPUT_SIZE), lambda i: (i, 0)),
            pl.BlockSpec((INPUT_SIZE, NUM_CLASSES), lambda i: (0, 0)),  # resident
            pl.BlockSpec((1, NUM_CLASSES), lambda i: (0, 0)),           # resident
        ],
        out_specs=pl.BlockSpec((tb, NUM_CLASSES), lambda i: (i, 0)),
        compiler_params=pltpu.CompilerParams(
            dimension_semantics=("parallel",)),        # megacore-shardable on v7x
    )(x2, w_bf, b2)

    return out


def init_params(key):
    """Deterministic init matching nn.Linear(784, 10): U(-1/sqrt(784), 1/sqrt(784))."""
    kw, kb = jax.random.split(key)
    bound = 1.0 / jnp.sqrt(jnp.float32(INPUT_SIZE))
    # Stored as (in_features, out_features) == PyTorch weight.T
    w = jax.random.uniform(kw, (INPUT_SIZE, NUM_CLASSES), jnp.float32,
                           minval=-bound, maxval=bound)
    b = jax.random.uniform(kb, (NUM_CLASSES,), jnp.float32,
                           minval=-bound, maxval=bound)
    return w, b


def _reference(x_nchw, w, b):
    """Pure-JAX reference using the same bf16 quantization as the kernel's MXU path."""
    B = x_nchw.shape[0]
    x = x_nchw.reshape(B, INPUT_SIZE).astype(jnp.float32) * 1.5 + 3.0
    xq = x.astype(jnp.bfloat16).astype(jnp.float32)
    wq = w.astype(jnp.bfloat16).astype(jnp.float32)
    logits = jnp.dot(xq, wq, precision=jax.lax.Precision.HIGHEST) \
        + b.astype(jnp.float32).reshape(1, NUM_CLASSES)
    a = jnp.abs(logits)
    return jax.nn.log_softmax(a, axis=1)


if __name__ == "__main__":
    key = jax.random.PRNGKey(0)
    k_x, k_p = jax.random.split(key)

    # MNIST-like batch; B=200 deliberately does NOT divide the 128-row tile,
    # exercising the cdiv grid / ragged-last-block write masking.
    B = 200
    x = jax.random.normal(k_x, (B, 1, 28, 28), jnp.float32)
    # `targ` exists in the PyTorch signature but is unused by forward.
    targ = jnp.zeros((B,), jnp.int32)

    w, b = init_params(k_p)

    out = seqnet_forward(x, w, b)
    out = jax.block_until_ready(out)

    assert out.shape == (B, NUM_CLASSES)
    # log_softmax rows should sum to ~1 in prob space
    assert jnp.allclose(jnp.sum(jnp.exp(out), axis=1), 1.0, atol=1e-4)
    # Match the (bf16-quantized) reference closely.
    ref = _reference(x, w, b)
    assert jnp.allclose(out, ref, atol=2e-3, rtol=2e-3), \
        float(jnp.max(jnp.abs(out - ref)))

    print("KERNEL_OK")
</pallas_src>

<mosaic_0001>
module attributes {stable_mosaic.version = 11 : i64} {
  func.func @seqnet_kernel(%arg0: i32, %arg1: memref<128x784xf32, #tpu.memory_space<vmem>>, %arg2: memref<784x10xbf16, #tpu.memory_space<vmem>>, %arg3: memref<1x10xf32, #tpu.memory_space<vmem>>, %arg4: memref<128x10xf32, #tpu.memory_space<vmem>>) attributes {dimension_semantics = [#tpu.dimension_semantics<parallel>], iteration_bounds = array<i64: 2>, scalar_prefetch = 0 : i64, scratch_operands = 0 : i64, tpu.core_type = #tpu.core_type<tc>, window_params = [{transform_indices = @transform_0, window_bounds = array<i64: 128, 784>}, {pipeline_mode = #tpu.pipeline_mode<synchronous>, transform_indices = @transform_1, window_bounds = array<i64: 784, 10>}, {pipeline_mode = #tpu.pipeline_mode<synchronous>, transform_indices = @transform_2, window_bounds = array<i64: 1, 10>}, {transform_indices = @transform_3, window_bounds = array<i64: 128, 10>}]} {
    %c0 = arith.constant 0 : index
    %c0_0 = arith.constant 0 : index
    %0 = vector.load %arg1[%c0, %c0_0] : memref<128x784xf32, #tpu.memory_space<vmem>>, vector<128x784xf32>
    %cst = arith.constant 1.500000e+00 : f32
    %1 = vector.broadcast %cst : f32 to vector<128x784xf32>
    %2 = arith.mulf %0, %1 : vector<128x784xf32>
    %cst_1 = arith.constant 3.000000e+00 : f32
    %3 = vector.broadcast %cst_1 : f32 to vector<128x784xf32>
    %4 = arith.addf %2, %3 : vector<128x784xf32>
    %5 = arith.truncf %4 : vector<128x784xf32> to vector<128x784xbf16>
    %c0_2 = arith.constant 0 : index
    %c0_3 = arith.constant 0 : index
    %6 = vector.load %arg2[%c0_2, %c0_3] : memref<784x10xbf16, #tpu.memory_space<vmem>>, vector<784x10xbf16>
    %cst_4 = arith.constant dense<0.000000e+00> : vector<128x10xf32>
    %7 = tpu.matmul %5, %6, %cst_4 {dimension_numbers = #tpu.dot_dimension_numbers<[1], [0], [0], [1], [0, 0, 1, 1], [], []>} : vector<128x784xbf16>, vector<784x10xbf16>, vector<128x10xf32> -> vector<128x10xf32>
    %c0_5 = arith.constant 0 : index
    %c0_6 = arith.constant 0 : index
    %8 = vector.load %arg3[%c0_5, %c0_6] : memref<1x10xf32, #tpu.memory_space<vmem>>, vector<1x10xf32>
    %9 = vector.broadcast %8 : vector<1x10xf32> to vector<128x10xf32>
    %10 = arith.addf %7, %9 : vector<128x10xf32>
    %11 = math.absf %10 : vector<128x10xf32>
    %cst_7 = arith.constant dense<0xFF800000> : vector<128xf32>
    %12 = vector.multi_reduction <maximumf>, %11, %cst_7 [1] : vector<128x10xf32> to vector<128xf32>
    %13 = vector.shape_cast %12 : vector<128xf32> to vector<128x1xf32>
    %14 = vector.broadcast %13 : vector<128x1xf32> to vector<128x10xf32>
    %15 = arith.subf %11, %14 : vector<128x10xf32>
    %16 = math.exp %15 : vector<128x10xf32>
    %cst_8 = arith.constant dense<0.000000e+00> : vector<128xf32>
    %17 = vector.multi_reduction <add>, %16, %cst_8 [1] : vector<128x10xf32> to vector<128xf32>
    %18 = vector.shape_cast %17 : vector<128xf32> to vector<128x1xf32>
    %19 = math.log %18 : vector<128x1xf32>
    %20 = arith.addf %13, %19 : vector<128x1xf32>
    %21 = vector.broadcast %20 : vector<128x1xf32> to vector<128x10xf32>
    %22 = arith.subf %11, %21 : vector<128x10xf32>
    %c0_9 = arith.constant 0 : index
    %c0_10 = arith.constant 0 : index
    %23 = vector.load %arg4[%c0_9, %c0_10] : memref<128x10xf32, #tpu.memory_space<vmem>>, vector<128x10xf32>
    tpu.vector_store %arg4[%c0_9, %c0_10], %22 {strides = array<i32>} : memref<128x10xf32, #tpu.memory_space<vmem>>, vector<128x10xf32>,
    return
  }
  func.func @transform_0(%arg0: i32) -> (i32, i32) {
    %c0_i32 = arith.constant 0 : i32
    %c0_i32_0 = arith.constant 0 : i32
    return %arg0, %c0_i32 : i32, i32
  }
  func.func @transform_1(%arg0: i32) -> (i32, i32) {
    %c0_i32 = arith.constant 0 : i32
    %c0_i32_0 = arith.constant 0 : i32
    %c0_i32_1 = arith.constant 0 : i32
    return %c0_i32, %c0_i32_0 : i32, i32
  }
  func.func @transform_2(%arg0: i32) -> (i32, i32) {
    %c0_i32 = arith.constant 0 : i32
    %c0_i32_0 = arith.constant 0 : i32
    %c0_i32_1 = arith.constant 0 : i32
    return %c0_i32, %c0_i32_0 : i32, i32
  }
  func.func @transform_3(%arg0: i32) -> (i32, i32) {
    %c0_i32 = arith.constant 0 : i32
    %c0_i32_0 = arith.constant 0 : i32
    return %arg0, %c0_i32 : i32, i32
  }
}

</mosaic_0001>

<llo_original>
// kernel: seqnet_forward.1
$region0: #{seqnet_forward.1}
  #allocation0 [shape = 'u32[]', space=smem, size = 0x4, offset = 0x4, fixed_abs, tag = 'smem constant byte address 0x4 - core index']
  #allocation1 [shape = 'u32[144,128]{1,0:T(1,128)}', space=vmem, size = 0x12000, scoped, tag = 'internal scratch']
  %s0 = inlined_call_operand.vmem [shape: f32[200,784], index: 0, kind: input, shape index: {}]
  %s1 = inlined_call_operand.vmem [shape: bf16[784,10], index: 1, kind: input, shape index: {}]
  %s2 = inlined_call_operand.vmem [shape: f32[1,10], index: 2, kind: input, shape index: {}]
  %s3 = inlined_call_operand.vmem [shape: f32[200,10], index: 3, kind: output, shape index: {}]
  %s4 = sld [smem:[#allocation0]]
  $region93: #{seqnet_forward.1} parent=0
    _
  %s6 = ssub.s32 1, %s4
  %s7 = scalar_select 0, %s6, %s4
  $region1: #{seqnet_forward.1} parent=0
    #allocation2 [shape = 'u8[131072]{0}', space=vmem, size = 0x20000, scoped, tag = 'output window, operand 0']
    loop: start=0, step=1, limit=4
    $region2: #{seqnet_forward.1} parent=1 // loop_pre_header
      _
    $region3: #{seqnet_forward.1} parent=1 // loop_header
      %s9 = sphi 0, %s13
      %p10 = scmp.ge.s32.totalorder %s9, 4
      %s19 = sphi 0, %s21
      %s22 = sphi 0, %s19
      %s23 = sphi 0, %s22
      %s39 = sphi 0, %s23
      %s43 = sphi 0, %s43
      %s45 = sphi 0, %s43
      %s46 = sphi 0, %s45
      %s60 = sphi 0, %s46
      %s64 = sphi 0, %s64
      %s66 = sphi 0, %s64
      %s67 = sphi 0, %s66
      %s81 = sphi 0, %s67
      %s87 = sphi 0, %s89
      %s90 = sphi 0, %s87
      %s91 = sphi 0, %s90
      %s107 = sphi 0, %s91
    $region4: #{seqnet_forward.1} parent=1 // loop_header_branch
      %12 = sbr.rel (%p10) target = $region8
    $region5: #{seqnet_forward.1} parent=1 // loop_body
      %s14 = ssub.s32 %s9, 1
      %s15 = ssub.s32 %s9, 2
      %s16 = sadd.s32 %s9, 1
      %s17 = ssub.s32 %s9, %s16
      %p18 = scmp.eq.s32.totalorder %s17, 0
      %s20 = sadd.s32 %s19, 1
      %s21 = scalar_select %p18, %s19, %s20
      %p24 = pneg %p18
      %p25 = scmp.eq.s32.totalorder %s9, 1
      %p26 = por %p24, %p25
      %p27 = scmp.ne.s32.totalorder %s19, %s22
      %p28 = scmp.eq.s32.totalorder %s9, 0
      %p29 = por %p27, %p28
      %p30 = scmp.ne.s32.totalorder %s19, %s22
      %p31 = scmp.eq.s32.totalorder %s14, 1
      %p32 = por %p30, %p31
      %p33 = scmp.ne.s32.totalorder %s22, %s23
      %p34 = scmp.eq.s32.totalorder %s14, 0
      %p35 = por %p33, %p34
      %p36 = scmp.ne.s32.totalorder %s22, %s23
      %p37 = scmp.eq.s32.totalorder %s15, 1
      %p38 = por %p36, %p37
      %p40 = scmp.ne.s32.totalorder %s23, %s39
      %p41 = scmp.eq.s32.totalorder %s15, 0
      %p42 = por %p40, %p41
      %s44 = sadd.s32 %s43, 1
      %p47 = scmp.eq.s32.totalorder %s9, 1
      %p48 = scmp.ne.s32.totalorder %s43, %s45
      %p49 = scmp.eq.s32.totalorder %s9, 0
      %p50 = por %p48, %p49
      %p51 = scmp.ne.s32.totalorder %s43, %s45
      %p52 = scmp.eq.s32.totalorder %s14, 1
      %p53 = por %p51, %p52
      %p54 = scmp.ne.s32.totalorder %s45, %s46
      %p55 = scmp.eq.s32.totalorder %s14, 0
      %p56 = por %p54, %p55
      %p57 = scmp.ne.s32.totalorder %s45, %s46
      %p58 = scmp.eq.s32.totalorder %s15, 1
      %p59 = por %p57, %p58
      %p61 = scmp.ne.s32.totalorder %s46, %s60
      %p62 = scmp.eq.s32.totalorder %s15, 0
      %p63 = por %p61, %p62
      %s65 = sadd.s32 %s64, 1
      %p68 = scmp.eq.s32.totalorder %s9, 1
      %p69 = scmp.ne.s32.totalorder %s64, %s66
      %p70 = scmp.eq.s32.totalorder %s9, 0
      %p71 = por %p69, %p70
      %p72 = scmp.ne.s32.totalorder %s64, %s66
      %p73 = scmp.eq.s32.totalorder %s14, 1
      %p74 = por %p72, %p73
      %p75 = scmp.ne.s32.totalorder %s66, %s67
      %p76 = scmp.eq.s32.totalorder %s14, 0
      %p77 = por %p75, %p76
      %p78 = scmp.ne.s32.totalorder %s66, %s67
      %p79 = scmp.eq.s32.totalorder %s15, 1
      %p80 = por %p78, %p79
      %p82 = scmp.ne.s32.totalorder %s67, %s81
      %p83 = scmp.eq.s32.totalorder %s15, 0
      %p84 = por %p82, %p83
      %s85 = ssub.s32 %s9, %s16
      %p86 = scmp.eq.s32.totalorder %s85, 0
      %s88 = sadd.s32 %s87, 1
      %s89 = scalar_select %p86, %s87, %s88
      %p92 = pneg %p86
      %p93 = scmp.eq.s32.totalorder %s9, 1
      %p94 = por %p92, %p93
      %p95 = scmp.ne.s32.totalorder %s87, %s90
      %p96 = scmp.eq.s32.totalorder %s9, 0
      %p97 = por %p95, %p96
      %p98 = scmp.ne.s32.totalorder %s87, %s90
      %p99 = scmp.eq.s32.totalorder %s14, 1
      %p100 = por %p98, %p99
      %p101 = scmp.ne.s32.totalorder %s90, %s91
      %p102 = scmp.eq.s32.totalorder %s14, 0
      %p103 = por %p101, %p102
      %p104 = scmp.ne.s32.totalorder %s90, %s91
      %p105 = scmp.eq.s32.totalorder %s15, 1
      %p106 = por %p104, %p105
      %p108 = scmp.ne.s32.totalorder %s91, %s107
      %p109 = scmp.eq.s32.totalorder %s15, 0
      %p110 = por %p108, %p109
      %p111 = scmp.le.s32.totalorder 1, %s9
      %p112 = scmp.lt.s32.totalorder %s9, 3
      %p113 = pnand %p111, %p112
      %p114 = pneg %p113
      // Predicated region
      $region9: #{seqnet_forward.1} parent=5 // pred_check
        _
      $region10: #{seqnet_forward.1} parent=5 // pred_check_branch
        %116 = sbr.rel (%p113) target = $region12
      $region11: #{seqnet_forward.1} parent=5 // pred_region
        %s117 = ssub.s32 %s9, 1
        // Predicated region
        $region13: #{seqnet_forward.1} parent=11 // pred_check
          %p118 = pneg %p56
        $region14: #{seqnet_forward.1} parent=11 // pred_check_branch
          %120 = sbr.rel (%p118) target = $region16
        $region15: #{seqnet_forward.1} parent=11 // pred_region
          _
        $region16: #{seqnet_forward.1} parent=11 // pred_fallthru
          _
        // Predicated region
        $region17: #{seqnet_forward.1} parent=11 // pred_check
          %p121 = pneg %p77
        $region18: #{seqnet_forward.1} parent=11 // pred_check_branch
          %123 = sbr.rel (%p121) target = $region20
        $region19: #{seqnet_forward.1} parent=11 // pred_region
          _
        $region20: #{seqnet_forward.1} parent=11 // pred_fallthru
          _
      $region12: #{seqnet_forward.1} parent=5 // pred_fallthru
        _
      %p124 = scmp.lt.s32.totalorder %s9, 2
      // Predicated region
      $region21: #{seqnet_forward.1} parent=5 // pred_check
        %p125 = pneg %p124
      $region22: #{seqnet_forward.1} parent=5 // pred_check_branch
        %127 = sbr.rel (%p125) target = $region24
      $region23: #{seqnet_forward.1} parent=5 // pred_region
        // Predicated region
        $region25: #{seqnet_forward.1} parent=23 // pred_check
          %p128 = pneg %p29
        $region26: #{seqnet_forward.1} parent=23 // pred_check_branch
          %130 = sbr.rel (%p128) target = $region28
        $region27: #{seqnet_forward.1} parent=23 // pred_region
          %s131 = smul.u32 16, %s9
          %s132 = ssub.s32 25, %s131
          %p133 = scmp.lt.s32.totalorder %s132, 16
          %s134 = scalar_select %p133, %s132, 16
          %s135 = smul.u32 128, %s134
          %s136 = smul.u32 %s135, 7
          %p137 = scmp.lt.s32.totalorder %s131, 24
          %s138 = scalar_select %p137, %s131, 24
          %s139 = smul.addr %s138, 7
          %s140 = smul.addr %s139, 8
          %s141 = scalar_lea.vmem %s0, %s140
          %s142 = smul.u32 16, %s9
          %s143 = ssub.s32 25, %s142
          %p144 = scmp.lt.s32.totalorder %s143, 16
          %s145 = scalar_select %p144, %s143, 16
          %s146 = smul.u32 128, %s145
          %s147 = smul.u32 %s146, 7
        $region28: #{seqnet_forward.1} parent=23 // pred_fallthru
          _
      $region24: #{seqnet_forward.1} parent=5 // pred_fallthru
        _
      %p148 = scmp.le.s32.totalorder 1, %s9
      %p149 = scmp.lt.s32.totalorder %s9, 3
      %p150 = pnand %p148, %p149
      %p151 = pneg %p150
      // Predicated region
      $region29: #{seqnet_forward.1} parent=5 // pred_check
        _
      $region30: #{seqnet_forward.1} parent=5 // pred_check_branch
        %153 = sbr.rel (%p150) target = $region32
      $region31: #{seqnet_forward.1} parent=5 // pred_region
        %s154 = ssub.s32 %s9, 1
        %s155 = smul.u32 16, %s14
        %s156 = ssub.s32 25, %s155
        %p157 = scmp.lt.s32.totalorder %s156, 16
        %s158 = scalar_select %p157, %s156, 16
        %s159 = smul.u32 128, %s158
        %s160 = smul.u32 %s159, 7
        %p161 = scmp.lt.s32.totalorder %s155, 24
        %s162 = scalar_select %p161, %s155, 24
        %s163 = smul.addr %s162, 7
        %s164 = smul.addr %s163, 8
        %s165 = scalar_lea.vmem %s0, %s164
        %p166 = pneg %p35
        %p167 = pneg %p32
        %p168 = pneg %p56
        %p169 = pneg %p53
        %p170 = pneg %p77
        %p171 = pneg %p74
        %p172 = pneg %p103
        %p173 = pneg %p100
        %s174 = sand.u32 %s90, 1
        %s175 = sand.u32 %s90, 1
        %s176 = smul.addr %s175, 128
        %s177 = scalar_lea.vmem [#allocation2], %s176
        %s178 = smul.u32 16, %s14
        %s179 = ssub.s32 25, %s178
        %p180 = scmp.lt.s32.totalorder %s179, 16
        %s181 = scalar_select %p180, %s179, 16
        %s182 = smul.u32 128, %s181
        %s183 = smul.u32 %s182, 7
        %p184 = scmp.lt.s32.totalorder %s178, 24
        %s185 = scalar_select %p184, %s178, 24
        %s186 = smul.addr %s185, 7
        %s187 = smul.addr %s186, 8
        %s188 = scalar_lea.vmem %s0, %s187
        %s189 = smul.u32 16, %s14
        %s190 = ssub.s32 25, %s189
        %p191 = scmp.lt.s32.totalorder %s190, 16
        %s192 = scalar_select %p191, %s190, 16
        %s193 = smul.u32 128, %s192
        %s194 = smul.u32 %s193, 7
        %s195 = smul.u32 16, %s14
        %s196 = ssub.s32 25, %s195
        %p197 = scmp.lt.s32.totalorder %s196, 16
        %s198 = scalar_select %p197, %s196, 16
        %s199 = smul.u32 128, %s198
        %v201 = vld [vmem:[%s188] sm:$0xff]
        %v202 = vld [vmem:[%s188 + $0x8] sm:$0xff]
        %v203 = vld [vmem:[%s188 + $0x10] sm:$0xff]
        %v204 = vld [vmem:[%s188 + $0x18] sm:$0xff]
        %v205 = vld [vmem:[%s188 + $0x20] sm:$0xff]
        %v206 = vld [vmem:[%s188 + $0x28] sm:$0xff]
        %v207 = vld [vmem:[%s188 + $0x30] sm:$0xff]
        %v208 = vld [vmem:[%s188 + $0x38] sm:$0xff]
        %v209 = vld [vmem:[%s188 + $0x40] sm:$0xff]
        %v210 = vld [vmem:[%s188 + $0x48] sm:$0xff]
        %v211 = vld [vmem:[%s188 + $0x50] sm:$0xff]
        %v212 = vld [vmem:[%s188 + $0x58] sm:$0xff]
        %v213 = vld [vmem:[%s188 + $0x60] sm:$0xff]
        %v214 = vld [vmem:[%s188 + $0x68] sm:$0xff]
        %v215 = vld [vmem:[%s188 + $0x70] sm:$0xff]
        %v216 = vld [vmem:[%s188 + $0x78] sm:$0xff]
        %v217 = vld [vmem:[%s188 + $0x80] sm:$0xff]
        %v218 = vld [vmem:[%s188 + $0x88] sm:$0xff]
        %v219 = vld [vmem:[%s188 + $0x90] sm:$0xff]
        %v220 = vld [vmem:[%s188 + $0x98] sm:$0xff]
        %v221 = vld [vmem:[%s188 + $0xa0] sm:$0xff]
        %v222 = vld [vmem:[%s188 + $0xa8] sm:$0xff]
        %v223 = vld [vmem:[%s188 + $0xb0] sm:$0xff]
        %v224 = vld [vmem:[%s188 + $0xb8] sm:$0xff]
        %v225 = vld [vmem:[%s188 + $0xc0] sm:$0xff]
        %v226 = vld [vmem:[%s188 + $0xc8] sm:$0xff]
        %v227 = vld [vmem:[%s188 + $0xd0] sm:$0xff]
        %v228 = vld [vmem:[%s188 + $0xd8] sm:$0xff]
        %v229 = vld [vmem:[%s188 + $0xe0] sm:$0xff]
        %v230 = vld [vmem:[%s188 + $0xe8] sm:$0xff]
        %v231 = vld [vmem:[%s188 + $0xf0] sm:$0xff]
        %v232 = vld [vmem:[%s188 + $0xf8] sm:$0xff]
        %v233 = vld [vmem:[%s188 + $0x100] sm:$0xff]
        %v234 = vld [vmem:[%s188 + $0x108] sm:$0xff]
        %v235 = vld [vmem:[%s188 + $0x110] sm:$0xff]
        %v236 = vld [vmem:[%s188 + $0x118] sm:$0xff]
        %v237 = vld [vmem:[%s188 + $0x120] sm:$0xff]
        %v238 = vld [vmem:[%s188 + $0x128] sm:$0xff]
        %v239 = vld [vmem:[%s188 + $0x130] sm:$0xff]
        %v240 = vld [vmem:[%s188 + $0x138] sm:$0xff]
        %v241 = vld [vmem:[%s188 + $0x140] sm:$0xff]
        %v242 = vld [vmem:[%s188 + $0x148] sm:$0xff]
        %v243 = vld [vmem:[%s188 + $0x150] sm:$0xff]
        %v244 = vld [vmem:[%s188 + $0x158] sm:$0xff]
        %v245 = vld [vmem:[%s188 + $0x160] sm:$0xff]
        %v246 = vld [vmem:[%s188 + $0x168] sm:$0xff]
        %v247 = vld [vmem:[%s188 + $0x170] sm:$0xff]
        %v248 = vld [vmem:[%s188 + $0x178] sm:$0xff]
        %v249 = vld [vmem:[%s188 + $0x180] sm:$0xff]
        %v250 = vld [vmem:[%s188 + $0x188] sm:$0xff]
        %v251 = vld [vmem:[%s188 + $0x190] sm:$0xff]
        %v252 = vld [vmem:[%s188 + $0x198] sm:$0xff]
        %v253 = vld [vmem:[%s188 + $0x1a0] sm:$0xff]
        %v254 = vld [vmem:[%s188 + $0x1a8] sm:$0xff]
        %v255 = vld [vmem:[%s188 + $0x1b0] sm:$0xff]
        %v256 = vld [vmem:[%s188 + $0x1b8] sm:$0xff]
        %v257 = vld [vmem:[%s188 + $0x1c0] sm:$0xff]
        %v258 = vld [vmem:[%s188 + $0x1c8] sm:$0xff]
        %v259 = vld [vmem:[%s188 + $0x1d0] sm:$0xff]
        %v260 = vld [vmem:[%s188 + $0x1d8] sm:$0xff]
        %v261 = vld [vmem:[%s188 + $0x1e0] sm:$0xff]
        %v262 = vld [vmem:[%s188 + $0x1e8] sm:$0xff]
        %v263 = vld [vmem:[%s188 + $0x1f0] sm:$0xff]
        %v264 = vld [vmem:[%s188 + $0x1f8] sm:$0xff]
        %v265 = vld [vmem:[%s188 + $0x200] sm:$0xff]
        %v266 = vld [vmem:[%s188 + $0x208] sm:$0xff]
        %v267 = vld [vmem:[%s188 + $0x210] sm:$0xff]
        %v268 = vld [vmem:[%s188 + $0x218] sm:$0xff]
        %v269 = vld [vmem:[%s188 + $0x220] sm:$0xff]
        %v270 = vld [vmem:[%s188 + $0x228] sm:$0xff]
        %v271 = vld [vmem:[%s188 + $0x230] sm:$0xff]
        %v272 = vld [vmem:[%s188 + $0x238] sm:$0xff]
        %v273 = vld [vmem:[%s188 + $0x240] sm:$0xff]
        %v274 = vld [vmem:[%s188 + $0x248] sm:$0xff]
        %v275 = vld [vmem:[%s188 + $0x250] sm:$0xff]
        %v276 = vld [vmem:[%s188 + $0x258] sm:$0xff]
        %v277 = vld [vmem:[%s188 + $0x260] sm:$0xff]
        %v278 = vld [vmem:[%s188 + $0x268] sm:$0xff]
        %v279 = vld [vmem:[%s188 + $0x270] sm:$0xff]
        %v280 = vld [vmem:[%s188 + $0x278] sm:$0xff]
        %v281 = vld [vmem:[%s188 + $0x280] sm:$0xff]
        %v282 = vld [vmem:[%s188 + $0x288] sm:$0xff]
        %v283 = vld [vmem:[%s188 + $0x290] sm:$0xff]
        %v284 = vld [vmem:[%s188 + $0x298] sm:$0xff]
        %v285 = vld [vmem:[%s188 + $0x2a0] sm:$0xff]
        %v286 = vld [vmem:[%s188 + $0x2a8] sm:$0xff]
        %v287 = vld [vmem:[%s188 + $0x2b0] sm:$0xff]
        %v288 = vld [vmem:[%s188 + $0x2b8] sm:$0xff]
        %v289 = vld [vmem:[%s188 + $0x2c0] sm:$0xff]
        %v290 = vld [vmem:[%s188 + $0x2c8] sm:$0xff]
        %v291 = vld [vmem:[%s188 + $0x2d0] sm:$0xff]
        %v292 = vld [vmem:[%s188 + $0x2d8] sm:$0xff]
        %v293 = vld [vmem:[%s188 + $0x2e0] sm:$0xff]
        %v294 = vld [vmem:[%s188 + $0x2e8] sm:$0xff]
        %v295 = vld [vmem:[%s188 + $0x2f0] sm:$0xff]
        %v296 = vld [vmem:[%s188 + $0x2f8] sm:$0xff]
        %v297 = vld [vmem:[%s188 + $0x300] sm:$0xff]
        %v298 = vld [vmem:[%s188 + $0x308] sm:$0xff]
        %v299 = vld [vmem:[%s188 + $0x310] sm:$0xff]
        %v300 = vld [vmem:[%s188 + $0x318] sm:$0xff]
        %v301 = vld [vmem:[%s188 + $0x320] sm:$0xff]
        %v302 = vld [vmem:[%s188 + $0x328] sm:$0xff]
        %v303 = vld [vmem:[%s188 + $0x330] sm:$0xff]
        %v304 = vld [vmem:[%s188 + $0x338] sm:$0xff]
        %v305 = vld [vmem:[%s188 + $0x340] sm:$0xff]
        %v306 = vld [vmem:[%s188 + $0x348] sm:$0xff]
        %v307 = vld [vmem:[%s188 + $0x350] sm:$0xff]
        %v308 = vld [vmem:[%s188 + $0x358] sm:$0xff]
        %v309 = vld [vmem:[%s188 + $0x360] sm:$0xff]
        %v310 = vld [vmem:[%s188 + $0x368] sm:$0xff]
        %v311 = vld [vmem:[%s188 + $0x370] sm:$0xff]
        %v312 = vld [vmem:[%s188 + $0x378] sm:$0xff]
        %v313 = vmul.f32 %v201, 1.5
        %v314 = vmul.f32 %v202, 1.5
        %v315 = vmul.f32 %v203, 1.5
        %v316 = vmul.f32 %v204, 1.5
        %v317 = vmul.f32 %v205, 1.5
        %v318 = vmul.f32 %v206, 1.5
        %v319 = vmul.f32 %v207, 1.5
        %v320 = vmul.f32 %v208, 1.5
        %v321 = vmul.f32 %v209, 1.5
        %v322 = vmul.f32 %v210, 1.5
        %v323 = vmul.f32 %v211, 1.5
        %v324 = vmul.f32 %v212, 1.5
        %v325 = vmul.f32 %v213, 1.5
        %v326 = vmul.f32 %v214, 1.5
        %v327 = vmul.f32 %v215, 1.5
        %v328 = vmul.f32 %v216, 1.5
        %v329 = vmul.f32 %v217, 1.5
        %v330 = vmul.f32 %v218, 1.5
        %v331 = vmul.f32 %v219, 1.5
        %v332 = vmul.f32 %v220, 1.5
        %v333 = vmul.f32 %v221, 1.5
        %v334 = vmul.f32 %v222, 1.5
        %v335 = vmul.f32 %v223, 1.5
        %v336 = vmul.f32 %v224, 1.5
        %v337 = vmul.f32 %v225, 1.5
        %v338 = vmul.f32 %v226, 1.5
        %v339 = vmul.f32 %v227, 1.5
        %v340 = vmul.f32 %v228, 1.5
        %v341 = vmul.f32 %v229, 1.5
        %v342 = vmul.f32 %v230, 1.5
        %v343 = vmul.f32 %v231, 1.5
        %v344 = vmul.f32 %v232, 1.5
        %v345 = vmul.f32 %v233, 1.5
        %v346 = vmul.f32 %v234, 1.5
        %v347 = vmul.f32 %v235, 1.5
        %v348 = vmul.f32 %v236, 1.5
        %v349 = vmul.f32 %v237, 1.5
        %v350 = vmul.f32 %v238, 1.5
        %v351 = vmul.f32 %v239, 1.5
        %v352 = vmul.f32 %v240, 1.5
        %v353 = vmul.f32 %v241, 1.5
        %v354 = vmul.f32 %v242, 1.5
        %v355 = vmul.f32 %v243, 1.5
        %v356 = vmul.f32 %v244, 1.5
        %v357 = vmul.f32 %v245, 1.5
        %v358 = vmul.f32 %v246, 1.5
        %v359 = vmul.f32 %v247, 1.5
        %v360 = vmul.f32 %v248, 1.5
        %v361 = vmul.f32 %v249, 1.5
        %v362 = vmul.f32 %v250, 1.5
        %v363 = vmul.f32 %v251, 1.5
        %v364 = vmul.f32 %v252, 1.5
        %v365 = vmul.f32 %v253, 1.5
        %v366 = vmul.f32 %v254, 1.5
        %v367 = vmul.f32 %v255, 1.5
        %v368 = vmul.f32 %v256, 1.5
        %v369 = vmul.f32 %v257, 1.5
        %v370 = vmul.f32 %v258, 1.5
        %v371 = vmul.f32 %v259, 1.5
        %v372 = vmul.f32 %v260, 1.5
        %v373 = vmul.f32 %v261, 1.5
        %v374 = vmul.f32 %v262, 1.5
        %v375 = vmul.f32 %v263, 1.5
        %v376 = vmul.f32 %v264, 1.5
        %v377 = vmul.f32 %v265, 1.5
        %v378 = vmul.f32 %v266, 1.5
        %v379 = vmul.f32 %v267, 1.5
        %v380 = vmul.f32 %v268, 1.5
        %v381 = vmul.f32 %v269, 1.5
        %v382 = vmul.f32 %v270, 1.5
        %v383 = vmul.f32 %v271, 1.5
        %v384 = vmul.f32 %v272, 1.5
        %v385 = vmul.f32 %v273, 1.5
        %v386 = vmul.f32 %v274, 1.5
        %v387 = vmul.f32 %v275, 1.5
        %v388 = vmul.f32 %v276, 1.5
        %v389 = vmul.f32 %v277, 1.5
        %v390 = vmul.f32 %v278, 1.5
        %v391 = vmul.f32 %v279, 1.5
        %v392 = vmul.f32 %v280, 1.5
        %v393 = vmul.f32 %v281, 1.5
        %v394 = vmul.f32 %v282, 1.5
        %v395 = vmul.f32 %v283, 1.5
        %v396 = vmul.f32 %v284, 1.5
        %v397 = vmul.f32 %v285, 1.5
        %v398 = vmul.f32 %v286, 1.5
        %v399 = vmul.f32 %v287, 1.5
        %v400 = vmul.f32 %v288, 1.5
        %v401 = vmul.f32 %v289, 1.5
        %v402 = vmul.f32 %v290, 1.5
        %v403 = vmul.f32 %v291, 1.5
        %v404 = vmul.f32 %v292, 1.5
        %v405 = vmul.f32 %v293, 1.5
        %v406 = vmul.f32 %v294, 1.5
        %v407 = vmul.f32 %v295, 1.5
        %v408 = vmul.f32 %v296, 1.5
        %v409 = vmul.f32 %v297, 1.5
        %v410 = vmul.f32 %v298, 1.5
        %v411 = vmul.f32 %v299, 1.5
        %v412 = vmul.f32 %v300, 1.5
        %v413 = vmul.f32 %v301, 1.5
        %v414 = vmul.f32 %v302, 1.5
        %v415 = vmul.f32 %v303, 1.5
        %v416 = vmul.f32 %v304, 1.5
        %v417 = vmul.f32 %v305, 1.5
        %v418 = vmul.f32 %v306, 1.5
        %v419 = vmul.f32 %v307, 1.5
        %v420 = vmul.f32 %v308, 1.5
        %v421 = vmul.f32 %v309, 1.5
        %v422 = vmul.f32 %v310, 1.5
        %v423 = vmul.f32 %v311, 1.5
        %v424 = vmul.f32 %v312, 1.5
        %v425 = vadd.f32 %v313, 3.0
        %v426 = vadd.f32 %v314, 3.0
        %v427 = vadd.f32 %v315, 3.0
        %v428 = vadd.f32 %v316, 3.0
        %v429 = vadd.f32 %v317, 3.0
        %v430 = vadd.f32 %v318, 3.0
        %v431 = vadd.f32 %v319, 3.0
        %v432 = vadd.f32 %v320, 3.0
        %v433 = vadd.f32 %v321, 3.0
        %v434 = vadd.f32 %v322, 3.0
        %v435 = vadd.f32 %v323, 3.0
        %v436 = vadd.f32 %v324, 3.0
        %v437 = vadd.f32 %v325, 3.0
        %v438 = vadd.f32 %v326, 3.0
        %v439 = vadd.f32 %v327, 3.0
        %v440 = vadd.f32 %v328, 3.0
        %v441 = vadd.f32 %v329, 3.0
        %v442 = vadd.f32 %v330, 3.0
        %v443 = vadd.f32 %v331, 3.0
        %v444 = vadd.f32 %v332, 3.0
        %v445 = vadd.f32 %v333, 3.0
        %v446 = vadd.f32 %v334, 3.0
        %v447 = vadd.f32 %v335, 3.0
        %v448 = vadd.f32 %v336, 3.0
        %v449 = vadd.f32 %v337, 3.0
        %v450 = vadd.f32 %v338, 3.0
        %v451 = vadd.f32 %v339, 3.0
        %v452 = vadd.f32 %v340, 3.0
        %v453 = vadd.f32 %v341, 3.0
        %v454 = vadd.f32 %v342, 3.0
        %v455 = vadd.f32 %v343, 3.0
        %v456 = vadd.f32 %v344, 3.0
        %v457 = vadd.f32 %v345, 3.0
        %v458 = vadd.f32 %v346, 3.0
        %v459 = vadd.f32 %v347, 3.0
        %v460 = vadd.f32 %v348, 3.0
        %v461 = vadd.f32 %v349, 3.0
        %v462 = vadd.f32 %v350, 3.0
        %v463 = vadd.f32 %v351, 3.0
        %v464 = vadd.f32 %v352, 3.0
        %v465 = vadd.f32 %v353, 3.0
        %v466 = vadd.f32 %v354, 3.0
        %v467 = vadd.f32 %v355, 3.0
        %v468 = vadd.f32 %v356, 3.0
        %v469 = vadd.f32 %v357, 3.0
        %v470 = vadd.f32 %v358, 3.0
        %v471 = vadd.f32 %v359, 3.0
        %v472 = vadd.f32 %v360, 3.0
        %v473 = vadd.f32 %v361, 3.0
        %v474 = vadd.f32 %v362, 3.0
        %v475 = vadd.f32 %v363, 3.0
        %v476 = vadd.f32 %v364, 3.0
        %v477 = vadd.f32 %v365, 3.0
        %v478 = vadd.f32 %v366, 3.0
        %v479 = vadd.f32 %v367, 3.0
        %v480 = vadd.f32 %v368, 3.0
        %v481 = vadd.f32 %v369, 3.0
        %v482 = vadd.f32 %v370, 3.0
        %v483 = vadd.f32 %v371, 3.0
        %v484 = vadd.f32 %v372, 3.0
        %v485 = vadd.f32 %v373, 3.0
        %v486 = vadd.f32 %v374, 3.0
        %v487 = vadd.f32 %v375, 3.0
        %v488 = vadd.f32 %v376, 3.0
        %v489 = vadd.f32 %v377, 3.0
        %v490 = vadd.f32 %v378, 3.0
        %v491 = vadd.f32 %v379, 3.0
        %v492 = vadd.f32 %v380, 3.0
        %v493 = vadd.f32 %v381, 3.0
        %v494 = vadd.f32 %v382, 3.0
        %v495 = vadd.f32 %v383, 3.0
        %v496 = vadd.f32 %v384, 3.0
        %v497 = vadd.f32 %v385, 3.0
        %v498 = vadd.f32 %v386, 3.0
        %v499 = vadd.f32 %v387, 3.0
        %v500 = vadd.f32 %v388, 3.0
        %v501 = vadd.f32 %v389, 3.0
        %v502 = vadd.f32 %v390, 3.0
        %v503 = vadd.f32 %v391, 3.0
        %v504 = vadd.f32 %v392, 3.0
        %v505 = vadd.f32 %v393, 3.0
        %v506 = vadd.f32 %v394, 3.0
        %v507 = vadd.f32 %v395, 3.0
        %v508 = vadd.f32 %v396, 3.0
        %v509 = vadd.f32 %v397, 3.0
        %v510 = vadd.f32 %v398, 3.0
        %v511 = vadd.f32 %v399, 3.0
        %v512 = vadd.f32 %v400, 3.0
        %v513 = vadd.f32 %v401, 3.0
        %v514 = vadd.f32 %v402, 3.0
        %v515 = vadd.f32 %v403, 3.0
        %v516 = vadd.f32 %v404, 3.0
        %v517 = vadd.f32 %v405, 3.0
        %v518 = vadd.f32 %v406, 3.0
        %v519 = vadd.f32 %v407, 3.0
        %v520 = vadd.f32 %v408, 3.0
        %v521 = vadd.f32 %v409, 3.0
        %v522 = vadd.f32 %v410, 3.0
        %v523 = vadd.f32 %v411, 3.0
        %v524 = vadd.f32 %v412, 3.0
        %v525 = vadd.f32 %v413, 3.0
        %v526 = vadd.f32 %v414, 3.0
        %v527 = vadd.f32 %v415, 3.0
        %v528 = vadd.f32 %v416, 3.0
        %v529 = vadd.f32 %v417, 3.0
        %v530 = vadd.f32 %v418, 3.0
        %v531 = vadd.f32 %v419, 3.0
        %v532 = vadd.f32 %v420, 3.0
        %v533 = vadd.f32 %v421, 3.0
        %v534 = vadd.f32 %v422, 3.0
        %v535 = vadd.f32 %v423, 3.0
        %v536 = vadd.f32 %v424, 3.0
        %v537 = vpack.c.bf16 %v432, %v425
        %v538 = vpack.c.bf16 %v433, %v426
        %v539 = vpack.c.bf16 %v434, %v427
        %v540 = vpack.c.bf16 %v435, %v428
        %v541 = vpack.c.bf16 %v436, %v429
        %v542 = vpack.c.bf16 %v437, %v430
        %v543 = vpack.c.bf16 %v438, %v431
        %v544 = vpack.c.bf16 %v446, %v439
        %v545 = vpack.c.bf16 %v447, %v440
        %v546 = vpack.c.bf16 %v448, %v441
        %v547 = vpack.c.bf16 %v449, %v442
        %v548 = vpack.c.bf16 %v450, %v443
        %v549 = vpack.c.bf16 %v451, %v444
        %v550 = vpack.c.bf16 %v452, %v445
        %v551 = vpack.c.bf16 %v460, %v453
        %v552 = vpack.c.bf16 %v461, %v454
        %v553 = vpack.c.bf16 %v462, %v455
        %v554 = vpack.c.bf16 %v463, %v456
        %v555 = vpack.c.bf16 %v464, %v457
        %v556 = vpack.c.bf16 %v465, %v458
        %v557 = vpack.c.bf16 %v466, %v459
        %v558 = vpack.c.bf16 %v474, %v467
        %v559 = vpack.c.bf16 %v475, %v468
        %v560 = vpack.c.bf16 %v476, %v469
        %v561 = vpack.c.bf16 %v477, %v470
        %v562 = vpack.c.bf16 %v478, %v471
        %v563 = vpack.c.bf16 %v479, %v472
        %v564 = vpack.c.bf16 %v480, %v473
        %v565 = vpack.c.bf16 %v488, %v481
        %v566 = vpack.c.bf16 %v489, %v482
        %v567 = vpack.c.bf16 %v490, %v483
        %v568 = vpack.c.bf16 %v491, %v484
        %v569 = vpack.c.bf16 %v492, %v485
        %v570 = vpack.c.bf16 %v493, %v486
        %v571 = vpack.c.bf16 %v494, %v487
        %v572 = vpack.c.bf16 %v502, %v495
        %v573 = vpack.c.bf16 %v503, %v496
        %v574 = vpack.c.bf16 %v504, %v497
        %v575 = vpack.c.bf16 %v505, %v498
        %v576 = vpack.c.bf16 %v506, %v499
        %v577 = vpack.c.bf16 %v507, %v500
        %v578 = vpack.c.bf16 %v508, %v501
        %v579 = vpack.c.bf16 %v516, %v509
        %v580 = vpack.c.bf16 %v517, %v510
        %v581 = vpack.c.bf16 %v518, %v511
        %v582 = vpack.c.bf16 %v519, %v512
        %v583 = vpack.c.bf16 %v520, %v513
        %v584 = vpack.c.bf16 %v521, %v514
        %v585 = vpack.c.bf16 %v522, %v515
        %v586 = vpack.c.bf16 %v530, %v523
        %v587 = vpack.c.bf16 %v531, %v524
        %v588 = vpack.c.bf16 %v532, %v525
        %v589 = vpack.c.bf16 %v533, %v526
        %v590 = vpack.c.bf16 %v534, %v527
        %v591 = vpack.c.bf16 %v535, %v528
        %v592 = vpack.c.bf16 %v536, %v529
        %v593 = vld [vmem:[%s1] sm:$0xf]
        %v594 = vld [vmem:[%s1 + $0x4] sm:$0xf]
        %v595 = vld [vmem:[%s1 + $0x8] sm:$0xf]
        %v596 = vld [vmem:[%s1 + $0xc] sm:$0xf]
        %v597 = vld [vmem:[%s1 + $0x10] sm:$0xf]
        %v598 = vld [vmem:[%s1 + $0x14] sm:$0xf]
        %v599 = vld [vmem:[%s1 + $0x18] sm:$0xf]
        %v600 = vld [vmem:[%s1 + $0x1c] sm:$0xf]
        %v601 = vld [vmem:[%s1 + $0x20] sm:$0xf]
        %v602 = vld [vmem:[%s1 + $0x24] sm:$0xf]
        %v603 = vld [vmem:[%s1 + $0x28] sm:$0xf]
        %v604 = vld [vmem:[%s1 + $0x2c] sm:$0xf]
        %v605 = vld [vmem:[%s1 + $0x30] sm:$0xf]
        %v606 = vld [vmem:[%s1 + $0x34] sm:$0xf]
        %v607 = vld [vmem:[%s1 + $0x38] sm:$0xf]
        %v608 = vld [vmem:[%s1 + $0x3c] sm:$0xf]
        %v609 = vld [vmem:[%s1 + $0x40] sm:$0xf]
        %v610 = vld [vmem:[%s1 + $0x44] sm:$0xf]
        %v611 = vld [vmem:[%s1 + $0x48] sm:$0xf]
        %v612 = vld [vmem:[%s1 + $0x4c] sm:$0xf]
        %v613 = vld [vmem:[%s1 + $0x50] sm:$0xf]
        %v614 = vld [vmem:[%s1 + $0x54] sm:$0xf]
        %v615 = vld [vmem:[%s1 + $0x58] sm:$0xf]
        %v616 = vld [vmem:[%s1 + $0x5c] sm:$0xf]
        %v617 = vld [vmem:[%s1 + $0x60] sm:$0xf]
        %v618 = vld [vmem:[%s1 + $0x64] sm:$0xf]
        %v619 = vld [vmem:[%s1 + $0x68] sm:$0xf]
        %v620 = vld [vmem:[%s1 + $0x6c] sm:$0xf]
        %v621 = vld [vmem:[%s1 + $0x70] sm:$0xf]
        %v622 = vld [vmem:[%s1 + $0x74] sm:$0xf]
        %v623 = vld [vmem:[%s1 + $0x78] sm:$0xf]
        %v624 = vld [vmem:[%s1 + $0x7c] sm:$0xf]
        %v625 = vld [vmem:[%s1 + $0x80] sm:$0xf]
        %v626 = vld [vmem:[%s1 + $0x84] sm:$0xf]
        %v627 = vld [vmem:[%s1 + $0x88] sm:$0xf]
        %v628 = vld [vmem:[%s1 + $0x8c] sm:$0xf]
        %v629 = vld [vmem:[%s1 + $0x90] sm:$0xf]
        %v630 = vld [vmem:[%s1 + $0x94] sm:$0xf]
        %v631 = vld [vmem:[%s1 + $0x98] sm:$0xf]
        %v632 = vld [vmem:[%s1 + $0x9c] sm:$0xf]
        %v633 = vld [vmem:[%s1 + $0xa0] sm:$0xf]
        %v634 = vld [vmem:[%s1 + $0xa4] sm:$0xf]
        %v635 = vld [vmem:[%s1 + $0xa8] sm:$0xf]
        %v636 = vld [vmem:[%s1 + $0xac] sm:$0xf]
        %v637 = vld [vmem:[%s1 + $0xb0] sm:$0xf]
        %v638 = vld [vmem:[%s1 + $0xb4] sm:$0xf]
        %v639 = vld [vmem:[%s1 + $0xb8] sm:$0xf]
        %v640 = vld [vmem:[%s1 + $0xbc] sm:$0xf]
        %v641 = vld [vmem:[%s1 + $0xc0] sm:$0xf]
        %v642 = vld [vmem:[%s1 + $0xc4] sm:$0xf]
        %v643 = vld [vmem:[%s1 + $0xc8] sm:$0xf]
        %v644 = vld [vmem:[%s1 + $0xcc] sm:$0xf]
        %v645 = vld [vmem:[%s1 + $0xd0] sm:$0xf]
        %v646 = vld [vmem:[%s1 + $0xd4] sm:$0xf]
        %v647 = vld [vmem:[%s1 + $0xd8] sm:$0xf]
        %v648 = vld [vmem:[%s1 + $0xdc] sm:$0xf]
        %v649 = vld [vmem:[%s1 + $0xe0] sm:$0xf]
        %v650 = vld [vmem:[%s1 + $0xe4] sm:$0xf]
        %v651 = vld [vmem:[%s1 + $0xe8] sm:$0xf]
        %v652 = vld [vmem:[%s1 + $0xec] sm:$0xf]
        %v653 = vld [vmem:[%s1 + $0xf0] sm:$0xf]
        %v654 = vld [vmem:[%s1 + $0xf4] sm:$0xf]
        %v655 = vld [vmem:[%s1 + $0xf8] sm:$0xf]
        %v656 = vld [vmem:[%s1 + $0xfc] sm:$0xf]
        %v657 = vld [vmem:[%s1 + $0x100] sm:$0xf]
        %v658 = vld [vmem:[%s1 + $0x104] sm:$0xf]
        %v659 = vld [vmem:[%s1 + $0x108] sm:$0xf]
        %v660 = vld [vmem:[%s1 + $0x10c] sm:$0xf]
        %v661 = vld [vmem:[%s1 + $0x110] sm:$0xf]
        %v662 = vld [vmem:[%s1 + $0x114] sm:$0xf]
        %v663 = vld [vmem:[%s1 + $0x118] sm:$0xf]
        %v664 = vld [vmem:[%s1 + $0x11c] sm:$0xf]
        %v665 = vld [vmem:[%s1 + $0x120] sm:$0xf]
        %v666 = vld [vmem:[%s1 + $0x124] sm:$0xf]
        %v667 = vld [vmem:[%s1 + $0x128] sm:$0xf]
        %v668 = vld [vmem:[%s1 + $0x12c] sm:$0xf]
        %v669 = vld [vmem:[%s1 + $0x130] sm:$0xf]
        %v670 = vld [vmem:[%s1 + $0x134] sm:$0xf]
        %v671 = vld [vmem:[%s1 + $0x138] sm:$0xf]
        %v672 = vld [vmem:[%s1 + $0x13c] sm:$0xf]
        %v673 = vld [vmem:[%s1 + $0x140] sm:$0xf]
        %v674 = vld [vmem:[%s1 + $0x144] sm:$0xf]
        %v675 = vld [vmem:[%s1 + $0x148] sm:$0xf]
        %v676 = vld [vmem:[%s1 + $0x14c] sm:$0xf]
        %v677 = vld [vmem:[%s1 + $0x150] sm:$0xf]
        %v678 = vld [vmem:[%s1 + $0x154] sm:$0xf]
        %v679 = vld [vmem:[%s1 + $0x158] sm:$0xf]
        %v680 = vld [vmem:[%s1 + $0x15c] sm:$0xf]
        %v681 = vld [vmem:[%s1 + $0x160] sm:$0xf]
        %v682 = vld [vmem:[%s1 + $0x164] sm:$0xf]
        %v683 = vld [vmem:[%s1 + $0x168] sm:$0xf]
        %v684 = vld [vmem:[%s1 + $0x16c] sm:$0xf]
        %v685 = vld [vmem:[%s1 + $0x170] sm:$0xf]
        %v686 = vld [vmem:[%s1 + $0x174] sm:$0xf]
        %v687 = vld [vmem:[%s1 + $0x178] sm:$0xf]
        %v688 = vld [vmem:[%s1 + $0x17c] sm:$0xf]
        %v689 = vld [vmem:[%s1 + $0x180] sm:$0xf]
        %v690 = vld [vmem:[%s1 + $0x184] sm:$0xf]
        %v691 = vld [vmem:[%s2] sm:$0x1]
        %v693 = vlaneseq
        %v694 = vshrl.u32 %v693, 7
        %v695 = vsub.s32 0, %v694
        %v696 = vrot.slane %v691, %v695
        %v796 = vunpack.c.l.b16 %v593
        %v797 = vunpack.c.l.b16 %v594
        %v798 = vunpack.c.l.b16 %v595
        %v799 = vunpack.c.l.b16 %v596
        %v800 = vunpack.c.l.b16 %v597
        %v801 = vunpack.c.l.b16 %v598
        %v802 = vunpack.c.l.b16 %v599
        %v803 = vunpack.c.l.b16 %v600
        %v804 = vunpack.c.l.b16 %v601
        %v805 = vunpack.c.l.b16 %v602
        %v806 = vunpack.c.l.b16 %v603
        %v807 = vunpack.c.l.b16 %v604
        %v808 = vunpack.c.l.b16 %v605
        %v809 = vunpack.c.l.b16 %v606
        %v810 = vunpack.c.l.b16 %v607
        %v811 = vunpack.c.l.b16 %v608
        %v812 = vunpack.c.l.b16 %v609
        %v813 = vunpack.c.l.b16 %v610
        %v814 = vunpack.c.l.b16 %v611
        %v815 = vunpack.c.l.b16 %v612
        %v816 = vunpack.c.l.b16 %v613
        %v817 = vunpack.c.l.b16 %v614
        %v818 = vunpack.c.l.b16 %v615
        %v819 = vunpack.c.l.b16 %v616
        %v820 = vunpack.c.l.b16 %v617
        %v821 = vunpack.c.l.b16 %v618
        %v822 = vunpack.c.l.b16 %v619
        %v823 = vunpack.c.l.b16 %v620
        %v824 = vunpack.c.l.b16 %v621
        %v825 = vunpack.c.l.b16 %v622
        %v826 = vunpack.c.l.b16 %v623
        %v827 = vunpack.c.l.b16 %v624
        %v828 = vunpack.c.l.b16 %v625
        %v829 = vunpack.c.l.b16 %v626
        %v830 = vunpack.c.l.b16 %v627
        %v831 = vunpack.c.l.b16 %v628
        %v832 = vunpack.c.l.b16 %v629
        %v833 = vunpack.c.l.b16 %v630
        %v834 = vunpack.c.l.b16 %v631
        %v835 = vunpack.c.l.b16 %v632
        %v836 = vunpack.c.l.b16 %v633
        %v837 = vunpack.c.l.b16 %v634
        %v838 = vunpack.c.l.b16 %v635
        %v839 = vunpack.c.l.b16 %v636
        %v840 = vunpack.c.l.b16 %v637
        %v841 = vunpack.c.l.b16 %v638
        %v842 = vunpack.c.l.b16 %v639
        %v843 = vunpack.c.l.b16 %v640
        %v844 = vunpack.c.l.b16 %v641
        %v845 = vunpack.c.l.b16 %v642
        %v846 = vunpack.c.l.b16 %v643
        %v847 = vunpack.c.l.b16 %v644
        %v848 = vunpack.c.l.b16 %v645
        %v849 = vunpack.c.l.b16 %v646
        %v850 = vunpack.c.l.b16 %v647
        %v851 = vunpack.c.l.b16 %v648
        %v852 = vunpack.c.l.b16 %v649
        %v853 = vunpack.c.l.b16 %v650
        %v854 = vunpack.c.l.b16 %v651
        %v855 = vunpack.c.l.b16 %v652
        %v856 = vunpack.c.l.b16 %v653
        %v857 = vunpack.c.l.b16 %v654
        %v858 = vunpack.c.l.b16 %v655
        %v859 = vunpack.c.l.b16 %v656
        %v860 = vunpack.c.l.b16 %v657
        %v861 = vunpack.c.l.b16 %v658
        %v862 = vunpack.c.l.b16 %v659
        %v863 = vunpack.c.l.b16 %v660
        %v864 = vunpack.c.l.b16 %v661
        %v865 = vunpack.c.l.b16 %v662
        %v866 = vunpack.c.l.b16 %v663
        %v867 = vunpack.c.l.b16 %v664
        %v868 = vunpack.c.l.b16 %v665
        %v869 = vunpack.c.l.b16 %v666
        %v870 = vunpack.c.l.b16 %v667
        %v871 = vunpack.c.l.b16 %v668
        %v872 = vunpack.c.l.b16 %v669
        %v873 = vunpack.c.l.b16 %v670
        %v874 = vunpack.c.l.b16 %v671
        %v875 = vunpack.c.l.b16 %v672
        %v876 = vunpack.c.l.b16 %v673
        %v877 = vunpack.c.l.b16 %v674
        %v878 = vunpack.c.l.b16 %v675
        %v879 = vunpack.c.l.b16 %v676
        %v880 = vunpack.c.l.b16 %v677
        %v881 = vunpack.c.l.b16 %v678
        %v882 = vunpack.c.l.b16 %v679
        %v883 = vunpack.c.l.b16 %v680
        %v884 = vunpack.c.l.b16 %v681
        %v885 = vunpack.c.l.b16 %v682
        %v886 = vunpack.c.l.b16 %v683
        %v887 = vunpack.c.l.b16 %v684
        %v888 = vunpack.c.l.b16 %v685
        %v889 = vunpack.c.l.b16 %v686
        %v890 = vunpack.c.l.b16 %v687
        %v891 = vunpack.c.l.b16 %v688
        %v892 = vunpack.c.l.b16 %v689
        %v893 = vunpack.c.l.b16 %v690
        %v894 = vpack.c.b16 %v797, %v796
        %v895 = vpack.c.b16 %v799, %v798
        %v896 = vpack.c.b16 %v801, %v800
        %v897 = vpack.c.b16 %v803, %v802
        %v898 = vpack.c.b16 %v805, %v804
        %v899 = vpack.c.b16 %v807, %v806
        %v900 = vpack.c.b16 %v809, %v808
        %v901 = vpack.c.b16 %v811, %v810
        %v902 = vpack.c.b16 %v813, %v812
        %v903 = vpack.c.b16 %v815, %v814
        %v904 = vpack.c.b16 %v817, %v816
        %v905 = vpack.c.b16 %v819, %v818
        %v906 = vpack.c.b16 %v821, %v820
        %v907 = vpack.c.b16 %v823, %v822
        %v908 = vpack.c.b16 %v825, %v824
        %v909 = vpack.c.b16 %v827, %v826
        %v910 = vpack.c.b16 %v829, %v828
        %v911 = vpack.c.b16 %v831, %v830
        %v912 = vpack.c.b16 %v833, %v832
        %v913 = vpack.c.b16 %v835, %v834
        %v914 = vpack.c.b16 %v837, %v836
        %v915 = vpack.c.b16 %v839, %v838
        %v916 = vpack.c.b16 %v841, %v840
        %v917 = vpack.c.b16 %v843, %v842
        %v918 = vpack.c.b16 %v845, %v844
        %v919 = vpack.c.b16 %v847, %v846
        %v920 = vpack.c.b16 %v849, %v848
        %v921 = vpack.c.b16 %v851, %v850
        %v922 = vpack.c.b16 %v853, %v852
        %v923 = vpack.c.b16 %v855, %v854
        %v924 = vpack.c.b16 %v857, %v856
        %v925 = vpack.c.b16 %v859, %v858
        %v926 = vpack.c.b16 %v861, %v860
        %v927 = vpack.c.b16 %v863, %v862
        %v928 = vpack.c.b16 %v865, %v864
        %v929 = vpack.c.b16 %v867, %v866
        %v930 = vpack.c.b16 %v869, %v868
        %v931 = vpack.c.b16 %v871, %v870
        %v932 = vpack.c.b16 %v873, %v872
        %v933 = vpack.c.b16 %v875, %v874
        %v934 = vpack.c.b16 %v877, %v876
        %v935 = vpack.c.b16 %v879, %v878
        %v936 = vpack.c.b16 %v881, %v880
        %v937 = vpack.c.b16 %v883, %v882
        %v938 = vpack.c.b16 %v885, %v884
        %v939 = vpack.c.b16 %v887, %v886
        %v940 = vpack.c.b16 %v889, %v888
        %v941 = vpack.c.b16 %v891, %v890
        %v942 = vpack.c.b16 %v893, %v892
        %vm992 = vcmask 130048
        %v994 = vsel %vm992, %v543, 0
        %v997 = vsel %vm992, %v550, 0
        %v1000 = vsel %vm992, %v557, 0
        %v1003 = vsel %vm992, %v564, 0
        %v1006 = vsel %vm992, %v571, 0
        %v1009 = vsel %vm992, %v578, 0
        %v1012 = vsel %vm992, %v585, 0
        %v1015 = vsel %vm992, %v592, 0
        %1017 = vmatprep.subr.bf16.mxu0 0
        %1018 = vmatpush1.bf16.msra.mxu0 %v901
        %1019 = vmatprep.subr.bf16.mxu0 0
        %1020 = vmatpush1.bf16.msra.mxu0 %v900
        %1021 = vmatprep.subr.bf16.mxu0 0
        %1022 = vmatpush1.bf16.msra.mxu0 %v899
        %1023 = vmatprep.subr.bf16.mxu0 0
        %1024 = vmatpush1.bf16.msra.mxu0 %v898
        %1025 = vmatprep.subr.bf16.mxu0 0
        %1026 = vmatpush1.bf16.msra.mxu0 %v897
        %1027 = vmatprep.subr.bf16.mxu0 0
        %1028 = vmatpush1.bf16.msra.mxu0 %v896
        %1029 = vmatprep.subr.bf16.mxu0 0
        %1030 = vmatpush1.bf16.msra.mxu0 %v895
        %1031 = vmatprep.subr.bf16.mxu0 0
        %1032 = vmatpush1.bf16.msra.mxu0 %v894
        %1033 = vmatprep.subr.bf16.mxu0 0
        %1034 = vmatpush2.bf16.msra.mxu0 %v909
        %1035 = vmatprep.subr.bf16.mxu0 0
        %1036 = vmatpush2.bf16.msra.mxu0 %v908
        %1037 = vmatprep.subr.bf16.mxu0 0
        %1038 = vmatpush2.bf16.msra.mxu0 %v907
        %1039 = vmatprep.subr.bf16.mxu0 0
        %1040 = vmatpush2.bf16.msra.mxu0 %v906
        %1041 = vmatprep.subr.bf16.mxu0 0
        %1042 = vmatpush2.bf16.msra.mxu0 %v905
        %1043 = vmatprep.subr.bf16.mxu0 0
        %1044 = vmatpush2.bf16.msra.mxu0 %v904
        %1045 = vmatprep.subr.bf16.mxu0 0
        %1046 = vmatpush2.bf16.msra.mxu0 %v903
        %1047 = vmatprep.subr.bf16.mxu0 0
        %1048 = vmatpush2.bf16.msra.mxu0 %v902
        %1049 = vmatprep.mubr.bf16.mxu0 %v538
        %1050 = vmatmul.mubr.bf16.gmra.mxu0 %v537
        %v1051 = vpop.f32.mrf.mxu0
        %v1052 = vadd.f32 %v696, %v1051
        %v1053 = vpop.f32.mrf.mxu0
        %v1054 = vpop.f32.mrf.mxu0
        %v1055 = vadd.f32 %v696, %v1054
        %v1056 = vpop.f32.mrf.mxu0
        %1057 = vmatprep.mubr.bf16.mxu0 %v545
        %1058 = vmatmul.mubr.bf16.gmra.mxu0 %v544
        %v1059 = vpop.f32.mrf.mxu0
        %v1060 = vadd.f32 %v696, %v1059
        %v1061 = vpop.f32.mrf.mxu0
        %v1062 = vpop.f32.mrf.mxu0
        %v1063 = vadd.f32 %v696, %v1062
        %v1064 = vpop.f32.mrf.mxu0
        %1065 = vmatprep.mubr.bf16.mxu0 %v552
        %1066 = vmatmul.mubr.bf16.gmra.mxu0 %v551
        %v1067 = vpop.f32.mrf.mxu0
        %v1068 = vadd.f32 %v696, %v1067
        %v1069 = vpop.f32.mrf.mxu0
        %v1070 = vpop.f32.mrf.mxu0
        %v1071 = vadd.f32 %v696, %v1070
        %v1072 = vpop.f32.mrf.mxu0
        %1073 = vmatprep.mubr.bf16.mxu0 %v559
        %1074 = vmatmul.mubr.bf16.gmra.mxu0 %v558
        %v1075 = vpop.f32.mrf.mxu0
        %v1076 = vadd.f32 %v696, %v1075
        %v1077 = vpop.f32.mrf.mxu0
        %v1078 = vpop.f32.mrf.mxu0
        %v1079 = vadd.f32 %v696, %v1078
        %v1080 = vpop.f32.mrf.mxu0
        %1081 = vmatprep.mubr.bf16.mxu0 %v566
        %1082 = vmatmul.mubr.bf16.gmra.mxu0 %v565
        %v1083 = vpop.f32.mrf.mxu0
        %v1084 = vadd.f32 %v696, %v1083
        %v1085 = vpop.f32.mrf.mxu0
        %v1086 = vpop.f32.mrf.mxu0
        %v1087 = vadd.f32 %v696, %v1086
        %v1088 = vpop.f32.mrf.mxu0
        %1089 = vmatprep.mubr.bf16.mxu0 %v573
        %1090 = vmatmul.mubr.bf16.gmra.mxu0 %v572
        %v1091 = vpop.f32.mrf.mxu0
        %v1092 = vadd.f32 %v696, %v1091
        %v1093 = vpop.f32.mrf.mxu0
        %v1094 = vpop.f32.mrf.mxu0
        %v1095 = vadd.f32 %v696, %v1094
        %v1096 = vpop.f32.mrf.mxu0
        %1097 = vmatprep.mubr.bf16.mxu0 %v580
        %1098 = vmatmul.mubr.bf16.gmra.mxu0 %v579
        %v1099 = vpop.f32.mrf.mxu0
        %v1100 = vadd.f32 %v696, %v1099
        %v1101 = vpop.f32.mrf.mxu0
        %v1102 = vpop.f32.mrf.mxu0
        %v1103 = vadd.f32 %v696, %v1102
        %v1104 = vpop.f32.mrf.mxu0
        %1105 = vmatprep.mubr.bf16.mxu0 %v587
        %1106 = vmatmul.mubr.bf16.gmra.mxu0 %v586
        %v1107 = vpop.f32.mrf.mxu0
        %v1108 = vadd.f32 %v696, %v1107
        %v1109 = vpop.f32.mrf.mxu0
        %v1110 = vpop.f32.mrf.mxu0
        %v1111 = vadd.f32 %v696, %v1110
        %v1112 = vpop.f32.mrf.mxu0
        %1113 = vdwg.mxu0
        %1114 = vmatprep.subr.bf16.mxu0 0
        %1115 = vmatpush1.bf16.msra.mxu0 %v917
        %1116 = vmatprep.subr.bf16.mxu0 0
        %1117 = vmatpush1.bf16.msra.mxu0 %v916
        %1118 = vmatprep.subr.bf16.mxu0 0
        %1119 = vmatpush1.bf16.msra.mxu0 %v915
        %1120 = vmatprep.subr.bf16.mxu0 0
        %1121 = vmatpush1.bf16.msra.mxu0 %v914
        %1122 = vmatprep.subr.bf16.mxu0 0
        %1123 = vmatpush1.bf16.msra.mxu0 %v913
        %1124 = vmatprep.subr.bf16.mxu0 0
        %1125 = vmatpush1.bf16.msra.mxu0 %v912
        %1126 = vmatprep.subr.bf16.mxu0 0
        %1127 = vmatpush1.bf16.msra.mxu0 %v911
        %1128 = vmatprep.subr.bf16.mxu0 0
        %1129 = vmatpush1.bf16.msra.mxu0 %v910
        %1130 = vmatprep.subr.bf16.mxu0 0
        %1131 = vmatpush2.bf16.msra.mxu0 %v925
        %1132 = vmatprep.subr.bf16.mxu0 0
        %1133 = vmatpush2.bf16.msra.mxu0 %v924
        %1134 = vmatprep.subr.bf16.mxu0 0
        %1135 = vmatpush2.bf16.msra.mxu0 %v923
        %1136 = vmatprep.subr.bf16.mxu0 0
        %1137 = vmatpush2.bf16.msra.mxu0 %v922
        %1138 = vmatprep.subr.bf16.mxu0 0
        %1139 = vmatpush2.bf16.msra.mxu0 %v921
        %1140 = vmatprep.subr.bf16.mxu0 0
        %1141 = vmatpush2.bf16.msra.mxu0 %v920
        %1142 = vmatprep.subr.bf16.mxu0 0
        %1143 = vmatpush2.bf16.msra.mxu0 %v919
        %1144 = vmatprep.subr.bf16.mxu0 0
        %1145 = vmatpush2.bf16.msra.mxu0 %v918
        %1146 = vmatprep.mubr.bf16.mxu0 %v540
        %1147 = vmatmul.mubr.bf16.gmra.mxu0 %v539
        %v1148 = vpop.f32.mrf.mxu0
        %v1149 = vadd.f32 %v1052, %v1148
        %v1150 = vpop.f32.mrf.mxu0
        %v1151 = vpop.f32.mrf.mxu0
        %v1152 = vadd.f32 %v1055, %v1151
        %v1153 = vpop.f32.mrf.mxu0
        %1154 = vmatprep.mubr.bf16.mxu0 %v547
        %1155 = vmatmul.mubr.bf16.gmra.mxu0 %v546
        %v1156 = vpop.f32.mrf.mxu0
        %v1157 = vadd.f32 %v1060, %v1156
        %v1158 = vpop.f32.mrf.mxu0
        %v1159 = vpop.f32.mrf.mxu0
        %v1160 = vadd.f32 %v1063, %v1159
        %v1161 = vpop.f32.mrf.mxu0
        %1162 = vmatprep.mubr.bf16.mxu0 %v554
        %1163 = vmatmul.mubr.bf16.gmra.mxu0 %v553
        %v1164 = vpop.f32.mrf.mxu0
        %v1165 = vadd.f32 %v1068, %v1164
        %v1166 = vpop.f32.mrf.mxu0
        %v1167 = vpop.f32.mrf.mxu0
        %v1168 = vadd.f32 %v1071, %v1167
        %v1169 = vpop.f32.mrf.mxu0
        %1170 = vmatprep.mubr.bf16.mxu0 %v561
        %1171 = vmatmul.mubr.bf16.gmra.mxu0 %v560
        %v1172 = vpop.f32.mrf.mxu0
        %v1173 = vadd.f32 %v1076, %v1172
        %v1174 = vpop.f32.mrf.mxu0
        %v1175 = vpop.f32.mrf.mxu0
        %v1176 = vadd.f32 %v1079, %v1175
        %v1177 = vpop.f32.mrf.mxu0
        %1178 = vmatprep.mubr.bf16.mxu0 %v568
        %1179 = vmatmul.mubr.bf16.gmra.mxu0 %v567
        %v1180 = vpop.f32.mrf.mxu0
        %v1181 = vadd.f32 %v1084, %v1180
        %v1182 = vpop.f32.mrf.mxu0
        %v1183 = vpop.f32.mrf.mxu0
        %v1184 = vadd.f32 %v1087, %v1183
        %v1185 = vpop.f32.mrf.mxu0
        %1186 = vmatprep.mubr.bf16.mxu0 %v575
        %1187 = vmatmul.mubr.bf16.gmra.mxu0 %v574
        %v1188 = vpop.f32.mrf.mxu0
        %v1189 = vadd.f32 %v1092, %v1188
        %v1190 = vpop.f32.mrf.mxu0
        %v1191 = vpop.f32.mrf.mxu0
        %v1192 = vadd.f32 %v1095, %v1191
        %v1193 = vpop.f32.mrf.mxu0
        %1194 = vmatprep.mubr.bf16.mxu0 %v582
        %1195 = vmatmul.mubr.bf16.gmra.mxu0 %v581
        %v1196 = vpop.f32.mrf.mxu0
        %v1197 = vadd.f32 %v1100, %v1196
        %v1198 = vpop.f32.mrf.mxu0
        %v1199 = vpop.f32.mrf.mxu0
        %v1200 = vadd.f32 %v1103, %v1199
        %v1201 = vpop.f32.mrf.mxu0
        %1202 = vmatprep.mubr.bf16.mxu0 %v589
        %1203 = vmatmul.mubr.bf16.gmra.mxu0 %v588
        %v1204 = vpop.f32.mrf.mxu0
        %v1205 = vadd.f32 %v1108, %v1204
        %v1206 = vpop.f32.mrf.mxu0
        %v1207 = vpop.f32.mrf.mxu0
        %v1208 = vadd.f32 %v1111, %v1207
        %v1209 = vpop.f32.mrf.mxu0
        %1210 = vdwg.mxu0
        %1211 = vmatprep.subr.bf16.mxu0 0
        %1212 = vmatpush1.bf16.msra.mxu0 %v933
        %1213 = vmatprep.subr.bf16.mxu0 0
        %1214 = vmatpush1.bf16.msra.mxu0 %v932
        %1215 = vmatprep.subr.bf16.mxu0 0
        %1216 = vmatpush1.bf16.msra.mxu0 %v931
        %1217 = vmatprep.subr.bf16.mxu0 0
        %1218 = vmatpush1.bf16.msra.mxu0 %v930
        %1219 = vmatprep.subr.bf16.mxu0 0
        %1220 = vmatpush1.bf16.msra.mxu0 %v929
        %1221 = vmatprep.subr.bf16.mxu0 0
        %1222 = vmatpush1.bf16.msra.mxu0 %v928
        %1223 = vmatprep.subr.bf16.mxu0 0
        %1224 = vmatpush1.bf16.msra.mxu0 %v927
        %1225 = vmatprep.subr.bf16.mxu0 0
        %1226 = vmatpush1.bf16.msra.mxu0 %v926
        %1227 = vmatprep.subr.bf16.mxu0 0
        %1228 = vmatpush2.bf16.msra.mxu0 %v941
        %1229 = vmatprep.subr.bf16.mxu0 0
        %1230 = vmatpush2.bf16.msra.mxu0 %v940
        %1231 = vmatprep.subr.bf16.mxu0 0
        %1232 = vmatpush2.bf16.msra.mxu0 %v939
        %1233 = vmatprep.subr.bf16.mxu0 0
        %1234 = vmatpush2.bf16.msra.mxu0 %v938
        %1235 = vmatprep.subr.bf16.mxu0 0
        %1236 = vmatpush2.bf16.msra.mxu0 %v937
        %1237 = vmatprep.subr.bf16.mxu0 0
        %1238 = vmatpush2.bf16.msra.mxu0 %v936
        %1239 = vmatprep.subr.bf16.mxu0 0
        %1240 = vmatpush2.bf16.msra.mxu0 %v935
        %1241 = vmatprep.subr.bf16.mxu0 0
        %1242 = vmatpush2.bf16.msra.mxu0 %v934
        %1243 = vmatprep.mubr.bf16.mxu0 %v542
        %1244 = vmatmul.mubr.bf16.gmra.mxu0 %v541
        %v1245 = vpop.f32.mrf.mxu0
        %v1246 = vadd.f32 %v1149, %v1245
        %v1247 = vpop.f32.mrf.mxu0
        %v1248 = vpop.f32.mrf.mxu0
        %v1249 = vadd.f32 %v1152, %v1248
        %v1250 = vpop.f32.mrf.mxu0
        %1251 = vmatprep.mubr.bf16.mxu0 %v549
        %1252 = vmatmul.mubr.bf16.gmra.mxu0 %v548
        %v1253 = vpop.f32.mrf.mxu0
        %v1254 = vadd.f32 %v1157, %v1253
        %v1255 = vpop.f32.mrf.mxu0
        %v1256 = vpop.f32.mrf.mxu0
        %v1257 = vadd.f32 %v1160, %v1256
        %v1258 = vpop.f32.mrf.mxu0
        %1259 = vmatprep.mubr.bf16.mxu0 %v556
        %1260 = vmatmul.mubr.bf16.gmra.mxu0 %v555
        %v1261 = vpop.f32.mrf.mxu0
        %v1262 = vadd.f32 %v1165, %v1261
        %v1263 = vpop.f32.mrf.mxu0
        %v1264 = vpop.f32.mrf.mxu0
        %v1265 = vadd.f32 %v1168, %v1264
        %v1266 = vpop.f32.mrf.mxu0
        %1267 = vmatprep.mubr.bf16.mxu0 %v563
        %1268 = vmatmul.mubr.bf16.gmra.mxu0 %v562
        %v1269 = vpop.f32.mrf.mxu0
        %v1270 = vadd.f32 %v1173, %v1269
        %v1271 = vpop.f32.mrf.mxu0
        %v1272 = vpop.f32.mrf.mxu0
        %v1273 = vadd.f32 %v1176, %v1272
        %v1274 = vpop.f32.mrf.mxu0
        %1275 = vmatprep.mubr.bf16.mxu0 %v570
        %1276 = vmatmul.mubr.bf16.gmra.mxu0 %v569
        %v1277 = vpop.f32.mrf.mxu0
        %v1278 = vadd.f32 %v1181, %v1277
        %v1279 = vpop.f32.mrf.mxu0
        %v1280 = vpop.f32.mrf.mxu0
        %v1281 = vadd.f32 %v1184, %v1280
        %v1282 = vpop.f32.mrf.mxu0
        %1283 = vmatprep.mubr.bf16.mxu0 %v577
        %1284 = vmatmul.mubr.bf16.gmra.mxu0 %v576
        %v1285 = vpop.f32.mrf.mxu0
        %v1286 = vadd.f32 %v1189, %v1285
        %v1287 = vpop.f32.mrf.mxu0
        %v1288 = vpop.f32.mrf.mxu0
        %v1289 = vadd.f32 %v1192, %v1288
        %v1290 = vpop.f32.mrf.mxu0
        %1291 = vmatprep.mubr.bf16.mxu0 %v584
        %1292 = vmatmul.mubr.bf16.gmra.mxu0 %v583
        %v1293 = vpop.f32.mrf.mxu0
        %v1294 = vadd.f32 %v1197, %v1293
        %v1295 = vpop.f32.mrf.mxu0
        %v1296 = vpop.f32.mrf.mxu0
        %v1297 = vadd.f32 %v1200, %v1296
        %v1298 = vpop.f32.mrf.mxu0
        %1299 = vmatprep.mubr.bf16.mxu0 %v591
        %1300 = vmatmul.mubr.bf16.gmra.mxu0 %v590
        %v1301 = vpop.f32.mrf.mxu0
        %v1302 = vadd.f32 %v1205, %v1301
        %v1303 = vpop.f32.mrf.mxu0
        %v1304 = vpop.f32.mrf.mxu0
        %v1305 = vadd.f32 %v1208, %v1304
        %v1306 = vpop.f32.mrf.mxu0
        %1307 = vdwg.mxu0
        %1308 = vmatprep.subr.bf16.mxu0 0
        %1309 = vmatpush1.bf16.msra.mxu0 0
        %1310 = vmatprep.subr.bf16.mxu0 0
        %1311 = vmatpush1.bf16.msra.mxu0 0
        %1312 = vmatprep.subr.bf16.mxu0 0
        %1313 = vmatpush1.bf16.msra.mxu0 0
        %1314 = vmatprep.subr.bf16.mxu0 0
        %1315 = vmatpush1.bf16.msra.mxu0 0
        %1316 = vmatprep.subr.bf16.mxu0 0
        %1317 = vmatpush1.bf16.msra.mxu0 0
        %1318 = vmatprep.subr.bf16.mxu0 0
        %1319 = vmatpush1.bf16.msra.mxu0 0
        %1320 = vmatprep.subr.bf16.mxu0 0
        %1321 = vmatpush1.bf16.msra.mxu0 0
        %1322 = vmatprep.subr.bf16.mxu0 0
        %1323 = vmatpush1.bf16.msra.mxu0 %v942
        %1324 = vmatprep.subr.bf16.mxu0 0
        %1325 = vmatpush2.bf16.msra.mxu0 0
        %1326 = vmatprep.subr.bf16.mxu0 0
        %1327 = vmatpush2.bf16.msra.mxu0 0
        %1328 = vmatprep.subr.bf16.mxu0 0
        %1329 = vmatpush2.bf16.msra.mxu0 0
        %1330 = vmatprep.subr.bf16.mxu0 0
        %1331 = vmatpush2.bf16.msra.mxu0 0
        %1332 = vmatprep.subr.bf16.mxu0 0
        %1333 = vmatpush2.bf16.msra.mxu0 0
        %1334 = vmatprep.subr.bf16.mxu0 0
        %1335 = vmatpush2.bf16.msra.mxu0 0
        %1336 = vmatprep.subr.bf16.mxu0 0
        %1337 = vmatpush2.bf16.msra.mxu0 0
        %1338 = vmatprep.subr.bf16.mxu0 0
        %1339 = vmatpush2.bf16.msra.mxu0 0
        %1340 = vmatprep.mubr.bf16.mxu0 0
        %1341 = vmatmul.mubr.bf16.gmra.mxu0 %v994
        %v1342 = vpop.f32.mrf.mxu0
        %v1343 = vadd.f32 %v1246, %v1342
        %v1344 = vpop.f32.mrf.mxu0
        %v1345 = vpop.f32.mrf.mxu0
        %v1346 = vadd.f32 %v1249, %v1345
        %v1347 = vpop.f32.mrf.mxu0
        %1348 = vmatprep.mubr.bf16.mxu0 0
        %1349 = vmatmul.mubr.bf16.gmra.mxu0 %v997
        %v1350 = vpop.f32.mrf.mxu0
        %v1351 = vadd.f32 %v1254, %v1350
        %v1352 = vpop.f32.mrf.mxu0
        %v1353 = vpop.f32.mrf.mxu0
        %v1354 = vadd.f32 %v1257, %v1353
        %v1355 = vpop.f32.mrf.mxu0
        %1356 = vmatprep.mubr.bf16.mxu0 0
        %1357 = vmatmul.mubr.bf16.gmra.mxu0 %v1000
        %v1358 = vpop.f32.mrf.mxu0
        %v1359 = vadd.f32 %v1262, %v1358
        %v1360 = vpop.f32.mrf.mxu0
        %v1361 = vpop.f32.mrf.mxu0
        %v1362 = vadd.f32 %v1265, %v1361
        %v1363 = vpop.f32.mrf.mxu0
        %1364 = vmatprep.mubr.bf16.mxu0 0
        %1365 = vmatmul.mubr.bf16.gmra.mxu0 %v1003
        %v1366 = vpop.f32.mrf.mxu0
        %v1367 = vadd.f32 %v1270, %v1366
        %v1368 = vpop.f32.mrf.mxu0
        %v1369 = vpop.f32.mrf.mxu0
        %v1370 = vadd.f32 %v1273, %v1369
        %v1371 = vpop.f32.mrf.mxu0
        %1372 = vmatprep.mubr.bf16.mxu0 0
        %1373 = vmatmul.mubr.bf16.gmra.mxu0 %v1006
        %v1374 = vpop.f32.mrf.mxu0
        %v1375 = vadd.f32 %v1278, %v1374
        %v1376 = vpop.f32.mrf.mxu0
        %v1377 = vpop.f32.mrf.mxu0
        %v1378 = vadd.f32 %v1281, %v1377
        %v1379 = vpop.f32.mrf.mxu0
        %1380 = vmatprep.mubr.bf16.mxu0 0
        %1381 = vmatmul.mubr.bf16.gmra.mxu0 %v1009
        %v1382 = vpop.f32.mrf.mxu0
        %v1383 = vadd.f32 %v1286, %v1382
        %v1384 = vpop.f32.mrf.mxu0
        %v1385 = vpop.f32.mrf.mxu0
        %v1386 = vadd.f32 %v1289, %v1385
        %v1387 = vpop.f32.mrf.mxu0
        %1388 = vmatprep.mubr.bf16.mxu0 0
        %1389 = vmatmul.mubr.bf16.gmra.mxu0 %v1012
        %v1390 = vpop.f32.mrf.mxu0
        %v1391 = vadd.f32 %v1294, %v1390
        %v1392 = vpop.f32.mrf.mxu0
        %v1393 = vpop.f32.mrf.mxu0
        %v1394 = vadd.f32 %v1297, %v1393
        %v1395 = vpop.f32.mrf.mxu0
        %1396 = vmatprep.mubr.bf16.mxu0 0
        %1397 = vmatmul.mubr.bf16.gmra.mxu0 %v1015
        %v1398 = vpop.f32.mrf.mxu0
        %v1399 = vadd.f32 %v1302, %v1398
        %v1400 = vpop.f32.mrf.mxu0
        %v1401 = vpop.f32.mrf.mxu0
        %v1402 = vadd.f32 %v1305, %v1401
        %v1403 = vpop.f32.mrf.mxu0
        %1404 = vdwg.mxu0
        %v1405 = vand.u32 2147483647, %v1343
        %v1406 = vand.u32 2147483647, %v1346
        %v1407 = vand.u32 2147483647, %v1351
        %v1408 = vand.u32 2147483647, %v1354
        %v1409 = vand.u32 2147483647, %v1359
        %v1410 = vand.u32 2147483647, %v1362
        %v1411 = vand.u32 2147483647, %v1367
        %v1412 = vand.u32 2147483647, %v1370
        %v1413 = vand.u32 2147483647, %v1375
        %v1414 = vand.u32 2147483647, %v1378
        %v1415 = vand.u32 2147483647, %v1383
        %v1416 = vand.u32 2147483647, %v1386
        %v1417 = vand.u32 2147483647, %v1391
        %v1418 = vand.u32 2147483647, %v1394
        %v1419 = vand.u32 2147483647, %v1399
        %v1420 = vand.u32 2147483647, %v1402
        %vm1421 = vcmask 80896
        %v1422 = vsel %vm1421, %v1405, -inf
        %1423 = vmax.xlane.f32.xlu0 %v1422
        %v1424 = vpop.xlane.xlu0 %1423
        %v1425 = vsel %vm1421, %v1406, -inf
        %1426 = vmax.xlane.f32.xlu0 %v1425
        %v1427 = vpop.xlane.xlu0 %1426
        %v1428 = vsel %vm1421, %v1407, -inf
        %1429 = vmax.xlane.f32.xlu0 %v1428
        %v1430 = vpop.xlane.xlu0 %1429
        %v1431 = vsel %vm1421, %v1408, -inf
        %1432 = vmax.xlane.f32.xlu0 %v1431
        %v1433 = vpop.xlane.xlu0 %1432
        %v1434 = vsel %vm1421, %v1409, -inf
        %1435 = vmax.xlane.f32.xlu0 %v1434
        %v1436 = vpop.xlane.xlu0 %1435
        %v1437 = vsel %vm1421, %v1410, -inf
        %1438 = vmax.xlane.f32.xlu0 %v1437
        %v1439 = vpop.xlane.xlu0 %1438
        %v1440 = vsel %vm1421, %v1411, -inf
        %1441 = vmax.xlane.f32.xlu0 %v1440
        %v1442 = vpop.xlane.xlu0 %1441
        %v1443 = vsel %vm1421, %v1412, -inf
        %1444 = vmax.xlane.f32.xlu0 %v1443
        %v1445 = vpop.xlane.xlu0 %1444
        %v1446 = vsel %vm1421, %v1413, -inf
        %1447 = vmax.xlane.f32.xlu0 %v1446
        %v1448 = vpop.xlane.xlu0 %1447
        %v1449 = vsel %vm1421, %v1414, -inf
        %1450 = vmax.xlane.f32.xlu0 %v1449
        %v1451 = vpop.xlane.xlu0 %1450
        %v1452 = vsel %vm1421, %v1415, -inf
        %1453 = vmax.xlane.f32.xlu0 %v1452
        %v1454 = vpop.xlane.xlu0 %1453
        %v1455 = vsel %vm1421, %v1416, -inf
        %1456 = vmax.xlane.f32.xlu0 %v1455
        %v1457 = vpop.xlane.xlu0 %1456
        %v1458 = vsel %vm1421, %v1417, -inf
        %1459 = vmax.xlane.f32.xlu0 %v1458
        %v1460 = vpop.xlane.xlu0 %1459
        %v1461 = vsel %vm1421, %v1418, -inf
        %1462 = vmax.xlane.f32.xlu0 %v1461
        %v1463 = vpop.xlane.xlu0 %1462
        %v1464 = vsel %vm1421, %v1419, -inf
        %1465 = vmax.xlane.f32.xlu0 %v1464
        %v1466 = vpop.xlane.xlu0 %1465
        %v1467 = vsel %vm1421, %v1420, -inf
        %1468 = vmax.xlane.f32.xlu0 %v1467
        %v1469 = vpop.xlane.xlu0 %1468
        %v1470 = vsub.f32 %v1405, %v1424
        %v1471 = vsub.f32 %v1406, %v1427
        %v1472 = vsub.f32 %v1407, %v1430
        %v1473 = vsub.f32 %v1408, %v1433
        %v1474 = vsub.f32 %v1409, %v1436
        %v1475 = vsub.f32 %v1410, %v1439
        %v1476 = vsub.f32 %v1411, %v1442
        %v1477 = vsub.f32 %v1412, %v1445
        %v1478 = vsub.f32 %v1413, %v1448
        %v1479 = vsub.f32 %v1414, %v1451
        %v1480 = vsub.f32 %v1415, %v1454
        %v1481 = vsub.f32 %v1416, %v1457
        %v1482 = vsub.f32 %v1417, %v1460
        %v1483 = vsub.f32 %v1418, %v1463
        %v1484 = vsub.f32 %v1419, %v1466
        %v1485 = vsub.f32 %v1420, %v1469
        %v1486 = vmul.f32 %v1470, 1.442695
        %v1487 = vpow.pop %v1486
        %v1488 = vmul.f32 %v1471, 1.442695
        %v1489 = vpow.pop %v1488
        %v1490 = vmul.f32 %v1472, 1.442695
        %v1491 = vpow.pop %v1490
        %v1492 = vmul.f32 %v1473, 1.442695
        %v1493 = vpow.pop %v1492
        %v1494 = vmul.f32 %v1474, 1.442695
        %v1495 = vpow.pop %v1494
        %v1496 = vmul.f32 %v1475, 1.442695
        %v1497 = vpow.pop %v1496
        %v1498 = vmul.f32 %v1476, 1.442695
        %v1499 = vpow.pop %v1498
        %v1500 = vmul.f32 %v1477, 1.442695
        %v1501 = vpow.pop %v1500
        %v1502 = vmul.f32 %v1478, 1.442695
        %v1503 = vpow.pop %v1502
        %v1504 = vmul.f32 %v1479, 1.442695
        %v1505 = vpow.pop %v1504
        %v1506 = vmul.f32 %v1480, 1.442695
        %v1507 = vpow.pop %v1506
        %v1508 = vmul.f32 %v1481, 1.442695
        %v1509 = vpow.pop %v1508
        %v1510 = vmul.f32 %v1482, 1.442695
        %v1511 = vpow.pop %v1510
        %v1512 = vmul.f32 %v1483, 1.442695
        %v1513 = vpow.pop %v1512
        %v1514 = vmul.f32 %v1484, 1.442695
        %v1515 = vpow.pop %v1514
        %v1516 = vmul.f32 %v1485, 1.442695
        %v1517 = vpow.pop %v1516
        %v1518 = vsel %vm1421, %v1487, 0.0
        %1519 = vadd.xlane.f32.xlu0 %v1518
        %v1520 = vpop.xlane.xlu0 %1519
        %v1521 = vsel %vm1421, %v1489, 0.0
        %1522 = vadd.xlane.f32.xlu0 %v1521
        %v1523 = vpop.xlane.xlu0 %1522
        %v1524 = vsel %vm1421, %v1491, 0.0
        %1525 = vadd.xlane.f32.xlu0 %v1524
        %v1526 = vpop.xlane.xlu0 %1525
        %v1527 = vsel %vm1421, %v1493, 0.0
        %1528 = vadd.xlane.f32.xlu0 %v1527
        %v1529 = vpop.xlane.xlu0 %1528
        %v1530 = vsel %vm1421, %v1495, 0.0
        %1531 = vadd.xlane.f32.xlu0 %v1530
        %v1532 = vpop.xlane.xlu0 %1531
        %v1533 = vsel %vm1421, %v1497, 0.0
        %1534 = vadd.xlane.f32.xlu0 %v1533
        %v1535 = vpop.xlane.xlu0 %1534
        %v1536 = vsel %vm1421, %v1499, 0.0
        %1537 = vadd.xlane.f32.xlu0 %v1536
        %v1538 = vpop.xlane.xlu0 %1537
        %v1539 = vsel %vm1421, %v1501, 0.0
        %1540 = vadd.xlane.f32.xlu0 %v1539
        %v1541 = vpop.xlane.xlu0 %1540
        %v1542 = vsel %vm1421, %v1503, 0.0
        %1543 = vadd.xlane.f32.xlu0 %v1542
        %v1544 = vpop.xlane.xlu0 %1543
        %v1545 = vsel %vm1421, %v1505, 0.0
        %1546 = vadd.xlane.f32.xlu0 %v1545
        %v1547 = vpop.xlane.xlu0 %1546
        %v1548 = vsel %vm1421, %v1507, 0.0
        %1549 = vadd.xlane.f32.xlu0 %v1548
        %v1550 = vpop.xlane.xlu0 %1549
        %v1551 = vsel %vm1421, %v1509, 0.0
        %1552 = vadd.xlane.f32.xlu0 %v1551
        %v1553 = vpop.xlane.xlu0 %1552
        %v1554 = vsel %vm1421, %v1511, 0.0
        %1555 = vadd.xlane.f32.xlu0 %v1554
        %v1556 = vpop.xlane.xlu0 %1555
        %v1557 = vsel %vm1421, %v1513, 0.0
        %1558 = vadd.xlane.f32.xlu0 %v1557
        %v1559 = vpop.xlane.xlu0 %1558
        %v1560 = vsel %vm1421, %v1515, 0.0
        %1561 = vadd.xlane.f32.xlu0 %v1560
        %v1562 = vpop.xlane.xlu0 %1561
        %v1563 = vsel %vm1421, %v1517, 0.0
        %1564 = vadd.xlane.f32.xlu0 %v1563
        %v1565 = vpop.xlane.xlu0 %1564
        %v1566 = vlog2.pop %v1520
        %v1567 = vmul.f32 %v1566, 0.6931472
        %v1568 = vlog2.pop %v1523
        %v1569 = vmul.f32 %v1568, 0.6931472
        %v1570 = vlog2.pop %v1526
        %v1571 = vmul.f32 %v1570, 0.6931472
        %v1572 = vlog2.pop %v1529
        %v1573 = vmul.f32 %v1572, 0.6931472
        %v1574 = vlog2.pop %v1532
        %v1575 = vmul.f32 %v1574, 0.6931472
        %v1576 = vlog2.pop %v1535
        %v1577 = vmul.f32 %v1576, 0.6931472
        %v1578 = vlog2.pop %v1538
        %v1579 = vmul.f32 %v1578, 0.6931472
        %v1580 = vlog2.pop %v1541
        %v1581 = vmul.f32 %v1580, 0.6931472
        %v1582 = vlog2.pop %v1544
        %v1583 = vmul.f32 %v1582, 0.6931472
        %v1584 = vlog2.pop %v1547
        %v1585 = vmul.f32 %v1584, 0.6931472
        %v1586 = vlog2.pop %v1550
        %v1587 = vmul.f32 %v1586, 0.6931472
        %v1588 = vlog2.pop %v1553
        %v1589 = vmul.f32 %v1588, 0.6931472
        %v1590 = vlog2.pop %v1556
        %v1591 = vmul.f32 %v1590, 0.6931472
        %v1592 = vlog2.pop %v1559
        %v1593 = vmul.f32 %v1592, 0.6931472
        %v1594 = vlog2.pop %v1562
        %v1595 = vmul.f32 %v1594, 0.6931472
        %v1596 = vlog2.pop %v1565
        %v1597 = vmul.f32 %v1596, 0.6931472
        %v1598 = vadd.f32 %v1424, %v1567
        %v1599 = vadd.f32 %v1427, %v1569
        %v1600 = vadd.f32 %v1430, %v1571
        %v1601 = vadd.f32 %v1433, %v1573
        %v1602 = vadd.f32 %v1436, %v1575
        %v1603 = vadd.f32 %v1439, %v1577
        %v1604 = vadd.f32 %v1442, %v1579
        %v1605 = vadd.f32 %v1445, %v1581
        %v1606 = vadd.f32 %v1448, %v1583
        %v1607 = vadd.f32 %v1451, %v1585
        %v1608 = vadd.f32 %v1454, %v1587
        %v1609 = vadd.f32 %v1457, %v1589
        %v1610 = vadd.f32 %v1460, %v1591
        %v1611 = vadd.f32 %v1463, %v1593
        %v1612 = vadd.f32 %v1466, %v1595
        %v1613 = vadd.f32 %v1469, %v1597
        %v1614 = vsub.f32 %v1405, %v1598
        %v1615 = vsub.f32 %v1406, %v1599
        %v1616 = vsub.f32 %v1407, %v1600
        %v1617 = vsub.f32 %v1408, %v1601
        %v1618 = vsub.f32 %v1409, %v1602
        %v1619 = vsub.f32 %v1410, %v1603
        %v1620 = vsub.f32 %v1411, %v1604
        %v1621 = vsub.f32 %v1412, %v1605
        %v1622 = vsub.f32 %v1413, %v1606
        %v1623 = vsub.f32 %v1414, %v1607
        %v1624 = vsub.f32 %v1415, %v1608
        %v1625 = vsub.f32 %v1416, %v1609
        %v1626 = vsub.f32 %v1417, %v1610
        %v1627 = vsub.f32 %v1418, %v1611
        %v1628 = vsub.f32 %v1419, %v1612
        %v1629 = vsub.f32 %v1420, %v1613
        %1630 = vst.msk [vmem:[%s177] sm:$0xff] %vm1421, %v1614
        %1631 = vst.msk [vmem:[%s177 + $0x8] sm:$0xff] %vm1421, %v1615
        %1632 = vst.msk [vmem:[%s177 + $0x10] sm:$0xff] %vm1421, %v1616
        %1633 = vst.msk [vmem:[%s177 + $0x18] sm:$0xff] %vm1421, %v1617
        %1634 = vst.msk [vmem:[%s177 + $0x20] sm:$0xff] %vm1421, %v1618
        %1635 = vst.msk [vmem:[%s177 + $0x28] sm:$0xff] %vm1421, %v1619
        %1636 = vst.msk [vmem:[%s177 + $0x30] sm:$0xff] %vm1421, %v1620
        %1637 = vst.msk [vmem:[%s177 + $0x38] sm:$0xff] %vm1421, %v1621
        %1638 = vst.msk [vmem:[%s177 + $0x40] sm:$0xff] %vm1421, %v1622
        %1639 = vst.msk [vmem:[%s177 + $0x48] sm:$0xff] %vm1421, %v1623
        %1640 = vst.msk [vmem:[%s177 + $0x50] sm:$0xff] %vm1421, %v1624
        %1641 = vst.msk [vmem:[%s177 + $0x58] sm:$0xff] %vm1421, %v1625
        %1642 = vst.msk [vmem:[%s177 + $0x60] sm:$0xff] %vm1421, %v1626
        %1643 = vst.msk [vmem:[%s177 + $0x68] sm:$0xff] %vm1421, %v1627
        %1644 = vst.msk [vmem:[%s177 + $0x70] sm:$0xff] %vm1421, %v1628
        %1645 = vst.msk [vmem:[%s177 + $0x78] sm:$0xff] %vm1421, %v1629
        %s1646 = sand.u32 %s90, 1
        %s1647 = sand.u32 %s90, 1
        %s1648 = smul.addr %s1647, 128
        %s1649 = scalar_lea.vmem [#allocation2], %s1648
        // Predicated region
        $region33: #{seqnet_forward.1} parent=31 // pred_check
          %p1650 = pneg %p100
        $region34: #{seqnet_forward.1} parent=31 // pred_check_branch
          %1652 = sbr.rel (%p1650) target = $region36
        $region35: #{seqnet_forward.1} parent=31 // pred_region
          %s1653 = smul.u32 16, %s14
          %s1654 = ssub.s32 25, %s1653
          %p1655 = scmp.lt.s32.totalorder %s1654, 16
          %s1656 = scalar_select %p1655, %s1654, 16
          %s1657 = smul.u32 128, %s1656
          %p1658 = scmp.ne.s32.totalorder 0, %s1657
          %s1659 = smul.addr %s1653, 8
          %s1660 = scalar_lea.vmem %s3, %s1659
          // Predicated region
          $region37: #{seqnet_forward.1} parent=35 // pred_check
            %p1661 = pneg %p1658
          $region38: #{seqnet_forward.1} parent=35 // pred_check_branch
            %1663 = sbr.rel (%p1661) target = $region40
          $region39: #{seqnet_forward.1} parent=35 // pred_region
            // Predicated region
            $region41: #{seqnet_forward.1} parent=39 // pred_check
              _
            $region42: #{seqnet_forward.1} parent=39 // pred_check_branch
              %1665 = sbr.rel (0) target = $region44
            $region43: #{seqnet_forward.1} parent=39 // pred_region
              // Predicated region
              $region63: #{seqnet_forward.1} parent=43 // pred_check
                _
              $region64: #{seqnet_forward.1} parent=43 // pred_check_branch
                %1745 = sbr.rel (0) target = $region66
              $region65: #{seqnet_forward.1} parent=43 // pred_region
                %s1746 = sshrl.u32 %s1656, 4
                // While loop
                $region67: #{seqnet_forward.1} parent=65 // loop_pre_header
                  _
                $region68: #{seqnet_forward.1} parent=65 // loop_header
                  %s1748 = sphi 0, %s1750
                  %p1749 = scmp.ge.s32.totalorder %s1748, %s1746
                  %s1753 = sphi 0, %s1790
                  %s1754 = sphi %s1649, %s1793
                  %s1755 = sphi %s1660, %s1794
                $region69: #{seqnet_forward.1} parent=65 // loop_header_branch
                  %1752 = sbr.rel (%p1749) target = $region73
                $region70: #{seqnet_forward.1} parent=65 // loop_body
                  %v1756 = vld [vmem:[%s1754] sm:$0xff]
                  %1757 = vst [vmem:[%s1755] sm:$0xff] %v1756
                  %v1758 = vld [vmem:[%s1754 + $0x8] sm:$0xff]
                  %1759 = vst [vmem:[%s1755 + $0x8] sm:$0xff] %v1758
                  %v1760 = vld [vmem:[%s1754 + $0x10] sm:$0xff]
                  %1761 = vst [vmem:[%s1755 + $0x10] sm:$0xff] %v1760
                  %v1762 = vld [vmem:[%s1754 + $0x18] sm:$0xff]
                  %1763 = vst [vmem:[%s1755 + $0x18] sm:$0xff] %v1762
                  %v1764 = vld [vmem:[%s1754 + $0x20] sm:$0xff]
                  %1765 = vst [vmem:[%s1755 + $0x20] sm:$0xff] %v1764
                  %v1766 = vld [vmem:[%s1754 + $0x28] sm:$0xff]
                  %1767 = vst [vmem:[%s1755 + $0x28] sm:$0xff] %v1766
                  %v1768 = vld [vmem:[%s1754 + $0x30] sm:$0xff]
                  %1769 = vst [vmem:[%s1755 + $0x30] sm:$0xff] %v1768
                  %v1770 = vld [vmem:[%s1754 + $0x38] sm:$0xff]
                  %1771 = vst [vmem:[%s1755 + $0x38] sm:$0xff] %v1770
                  %v1772 = vld [vmem:[%s1754 + $0x40] sm:$0xff]
                  %1773 = vst [vmem:[%s1755 + $0x40] sm:$0xff] %v1772
                  %v1774 = vld [vmem:[%s1754 + $0x48] sm:$0xff]
                  %1775 = vst [vmem:[%s1755 + $0x48] sm:$0xff] %v1774
                  %v1776 = vld [vmem:[%s1754 + $0x50] sm:$0xff]
                  %1777 = vst [vmem:[%s1755 + $0x50] sm:$0xff] %v1776
                  %v1778 = vld [vmem:[%s1754 + $0x58] sm:$0xff]
                  %1779 = vst [vmem:[%s1755 + $0x58] sm:$0xff] %v1778
                  %v1780 = vld [vmem:[%s1754 + $0x60] sm:$0xff]
                  %1781 = vst [vmem:[%s1755 + $0x60] sm:$0xff] %v1780
                  %v1782 = vld [vmem:[%s1754 + $0x68] sm:$0xff]
                  %1783 = vst [vmem:[%s1755 + $0x68] sm:$0xff] %v1782
                  %v1784 = vld [vmem:[%s1754 + $0x70] sm:$0xff]
                  %1785 = vst [vmem:[%s1755 + $0x70] sm:$0xff] %v1784
                  %v1786 = vld [vmem:[%s1754 + $0x78] sm:$0xff]
                  %1787 = vst [vmem:[%s1755 + $0x78] sm:$0xff] %v1786
                  %s1788 = sadd.s32 1, %s1753
                  %p1789 = scmp.ge.s32.totalorder %s1788, %s1746
                  %s1790 = scalar_select %p1789, 0, %s1788
                  %s1791 = smul.u32 %s1790, 128
                  %s1792 = smul.u32 %s1790, 128
                  %s1793 = scalar_lea.vmem %s1649, %s1791 [#allocation2]
                  %s1794 = scalar_lea.vmem %s1660, %s1792
                $region71: #{seqnet_forward.1} parent=65 // loop_footer
                  %s1750 = sadd.s32 %s1748, 1
                $region72: #{seqnet_forward.1} parent=65 // loop_footer_branch
                  %1747 = sbr.rel target = $region68
                $region73: #{seqnet_forward.1} parent=65 // loop_exit
                  _
                %s1795 = sshrl.u32 %s1656, 4
                %s1796 = sand.u32 %s1656, 15
                %s1797 = smul.u32 %s1795, 16
                %s1798 = smul.u32 8, %s1797
                %s1799 = scalar_lea.vmem %s1649, %s1798 [#allocation2]
                %s1800 = smul.u32 8, %s1797
                %s1801 = scalar_lea.vmem %s1660, %s1800
                // While loop
                $region74: #{seqnet_forward.1} parent=65 // loop_pre_header
                  _
                $region75: #{seqnet_forward.1} parent=65 // loop_header
                  %s1803 = sphi 0, %s1805
                  %p1804 = scmp.ge.s32.totalorder %s1803, %s1796
                  %s1808 = sphi 0, %s1815
                  %s1809 = sphi %s1799, %s1818
                  %s1810 = sphi %s1801, %s1819
                $region76: #{seqnet_forward.1} parent=65 // loop_header_branch
                  %1807 = sbr.rel (%p1804) target = $region80
                $region77: #{seqnet_forward.1} parent=65 // loop_body
                  %v1811 = vld [vmem:[%s1809] sm:$0xff]
                  %1812 = vst [vmem:[%s1810] sm:$0xff] %v1811
                  %s1813 = sadd.s32 1, %s1808
                  %p1814 = scmp.ge.s32.totalorder %s1813, %s1796
                  %s1815 = scalar_select %p1814, 0, %s1813
                  %s1816 = smul.u32 %s1815, 8
                  %s1817 = smul.u32 %s1815, 8
                  %s1818 = scalar_lea.vmem %s1799, %s1816 [#allocation2]
                  %s1819 = scalar_lea.vmem %s1801, %s1817
                $region78: #{seqnet_forward.1} parent=65 // loop_footer
                  %s1805 = sadd.s32 %s1803, 1
                $region79: #{seqnet_forward.1} parent=65 // loop_footer_branch
                  %1802 = sbr.rel target = $region75
                $region80: #{seqnet_forward.1} parent=65 // loop_exit
                  _
              $region66: #{seqnet_forward.1} parent=43 // pred_fallthru
                _
              // Predicated region
              $region81: #{seqnet_forward.1} parent=43 // pred_check
                _
              $region82: #{seqnet_forward.1} parent=43 // pred_check_branch
                %1821 = sbr.rel target = $region84
              $region83: #{seqnet_forward.1} parent=43 // pred_region
                _
              $region84: #{seqnet_forward.1} parent=43 // pred_fallthru
                _
            $region44: #{seqnet_forward.1} parent=39 // pred_fallthru
              _
            // Predicated region
            $region45: #{seqnet_forward.1} parent=39 // pred_check
              _
            $region46: #{seqnet_forward.1} parent=39 // pred_check_branch
              %1667 = sbr.rel target = $region48
            $region47: #{seqnet_forward.1} parent=39 // pred_region
              %s1669 = ssub.s32 256, 1
              %s1670 = sshrl.u32 %s1656, 4
              // While loop
              $region49: #{seqnet_forward.1} parent=47 // loop_pre_header
                _
              $region50: #{seqnet_forward.1} parent=47 // loop_header
                %s1672 = sphi 0, %s1674
                %p1673 = scmp.ge.s32.totalorder %s1672, %s1670
                %s1677 = sphi 0, %s1714
                %s1678 = sphi %s1649, %s1717
                %s1679 = sphi %s1660, %s1718
              $region51: #{seqnet_forward.1} parent=47 // loop_header_branch
                %1676 = sbr.rel (%p1673) target = $region55
              $region52: #{seqnet_forward.1} parent=47 // loop_body
                %v1680 = vld [vmem:[%s1678] sm:%s1669]
                %1681 = vst [vmem:[%s1679] sm:%s1669] %v1680
                %v1682 = vld [vmem:[%s1678 + $0x8] sm:%s1669]
                %1683 = vst [vmem:[%s1679 + $0x8] sm:%s1669] %v1682
                %v1684 = vld [vmem:[%s1678 + $0x10] sm:%s1669]
                %1685 = vst [vmem:[%s1679 + $0x10] sm:%s1669] %v1684
                %v1686 = vld [vmem:[%s1678 + $0x18] sm:%s1669]
                %1687 = vst [vmem:[%s1679 + $0x18] sm:%s1669] %v1686
                %v1688 = vld [vmem:[%s1678 + $0x20] sm:%s1669]
                %1689 = vst [vmem:[%s1679 + $0x20] sm:%s1669] %v1688
                %v1690 = vld [vmem:[%s1678 + $0x28] sm:%s1669]
                %1691 = vst [vmem:[%s1679 + $0x28] sm:%s1669] %v1690
                %v1692 = vld [vmem:[%s1678 + $0x30] sm:%s1669]
                %1693 = vst [vmem:[%s1679 + $0x30] sm:%s1669] %v1692
                %v1694 = vld [vmem:[%s1678 + $0x38] sm:%s1669]
                %1695 = vst [vmem:[%s1679 + $0x38] sm:%s1669] %v1694
                %v1696 = vld [vmem:[%s1678 + $0x40] sm:%s1669]
                %1697 = vst [vmem:[%s1679 + $0x40] sm:%s1669] %v1696
                %v1698 = vld [vmem:[%s1678 + $0x48] sm:%s1669]
                %1699 = vst [vmem:[%s1679 + $0x48] sm:%s1669] %v1698
                %v1700 = vld [vmem:[%s1678 + $0x50] sm:%s1669]
                %1701 = vst [vmem:[%s1679 + $0x50] sm:%s1669] %v1700
                %v1702 = vld [vmem:[%s1678 + $0x58] sm:%s1669]
                %1703 = vst [vmem:[%s1679 + $0x58] sm:%s1669] %v1702
                %v1704 = vld [vmem:[%s1678 + $0x60] sm:%s1669]
                %1705 = vst [vmem:[%s1679 + $0x60] sm:%s1669] %v1704
                %v1706 = vld [vmem:[%s1678 + $0x68] sm:%s1669]
                %1707 = vst [vmem:[%s1679 + $0x68] sm:%s1669] %v1706
                %v1708 = vld [vmem:[%s1678 + $0x70] sm:%s1669]
                %1709 = vst [vmem:[%s1679 + $0x70] sm:%s1669] %v1708
                %v1710 = vld [vmem:[%s1678 + $0x78] sm:%s1669]
                %1711 = vst [vmem:[%s1679 + $0x78] sm:%s1669] %v1710
                %s1712 = sadd.s32 1, %s1677
                %p1713 = scmp.ge.s32.totalorder %s1712, %s1670
                %s1714 = scalar_select %p1713, 0, %s1712
                %s1715 = smul.u32 %s1714, 128
                %s1716 = smul.u32 %s1714, 128
                %s1717 = scalar_lea.vmem %s1649, %s1715 [#allocation2]
                %s1718 = scalar_lea.vmem %s1660, %s1716
              $region53: #{seqnet_forward.1} parent=47 // loop_footer
                %s1674 = sadd.s32 %s1672, 1
              $region54: #{seqnet_forward.1} parent=47 // loop_footer_branch
                %1671 = sbr.rel target = $region50
              $region55: #{seqnet_forward.1} parent=47 // loop_exit
                _
              %s1719 = sshrl.u32 %s1656, 4
              %s1720 = sand.u32 %s1656, 15
              %s1721 = smul.u32 %s1719, 16
              %s1722 = smul.u32 8, %s1721
              %s1723 = scalar_lea.vmem %s1649, %s1722 [#allocation2]
              %s1724 = smul.u32 8, %s1721
              %s1725 = scalar_lea.vmem %s1660, %s1724
              // While loop
              $region56: #{seqnet_forward.1} parent=47 // loop_pre_header
                _
              $region57: #{seqnet_forward.1} parent=47 // loop_header
                %s1727 = sphi 0, %s1729
                %p1728 = scmp.ge.s32.totalorder %s1727, %s1720
                %s1732 = sphi 0, %s1739
                %s1733 = sphi %s1723, %s1742
                %s1734 = sphi %s1725, %s1743
              $region58: #{seqnet_forward.1} parent=47 // loop_header_branch
                %1731 = sbr.rel (%p1728) target = $region62
              $region59: #{seqnet_forward.1} parent=47 // loop_body
                %v1735 = vld [vmem:[%s1733] sm:%s1669]
                %1736 = vst [vmem:[%s1734] sm:%s1669] %v1735
                %s1737 = sadd.s32 1, %s1732
                %p1738 = scmp.ge.s32.totalorder %s1737, %s1720
                %s1739 = scalar_select %p1738, 0, %s1737
                %s1740 = smul.u32 %s1739, 8
                %s1741 = smul.u32 %s1739, 8
                %s1742 = scalar_lea.vmem %s1723, %s1740 [#allocation2]
                %s1743 = scalar_lea.vmem %s1725, %s1741
              $region60: #{seqnet_forward.1} parent=47 // loop_footer
                %s1729 = sadd.s32 %s1727, 1
              $region61: #{seqnet_forward.1} parent=47 // loop_footer_branch
                %1726 = sbr.rel target = $region57
              $region62: #{seqnet_forward.1} parent=47 // loop_exit
                _
            $region48: #{seqnet_forward.1} parent=39 // pred_fallthru
              _
          $region40: #{seqnet_forward.1} parent=35 // pred_fallthru
            _
          %1822 = vnop
        $region36: #{seqnet_forward.1} parent=31 // pred_fallthru
          _
      $region32: #{seqnet_forward.1} parent=5 // pred_fallthru
        _
      %p1823 = scmp.le.s32.totalorder 2, %s9
      // Predicated region
      $region85: #{seqnet_forward.1} parent=5 // pred_check
        %p1824 = pneg %p1823
      $region86: #{seqnet_forward.1} parent=5 // pred_check_branch
        %1826 = sbr.rel (%p1824) target = $region88
      $region87: #{seqnet_forward.1} parent=5 // pred_region
        %s1827 = ssub.s32 %s9, 2
        // Predicated region
        $region89: #{seqnet_forward.1} parent=87 // pred_check
          %p1828 = pneg %p106
        $region90: #{seqnet_forward.1} parent=87 // pred_check_branch
          %1830 = sbr.rel (%p1828) target = $region92
        $region91: #{seqnet_forward.1} parent=87 // pred_region
          %s1831 = sand.u32 %s91, 1
          %s1832 = sand.u32 %s91, 1
          %s1833 = smul.addr %s1832, 128
          %s1834 = scalar_lea.vmem [#allocation2], %s1833
        $region92: #{seqnet_forward.1} parent=87 // pred_fallthru
          _
      $region88: #{seqnet_forward.1} parent=5 // pred_fallthru
        _
    $region6: #{seqnet_forward.1} parent=1 // loop_footer
      %s13 = sadd.s32 1, %s9
    $region7: #{seqnet_forward.1} parent=1 // loop_footer_branch
      %8 = sbr.rel target = $region3
    $region8: #{seqnet_forward.1} parent=1 // loop_exit
      _

</llo_original>
